<compile_context>
chip_gen: v6e
topology: v6e:2x2x1
jax: 0.10.0
libtpu: 0.0.40
codegen_flags: <defaults>
</compile_context>

<pallas_src>
from functools import partial

import jax
import jax.numpy as jnp
from jax.experimental import pallas as pl
from jax.experimental.pallas import tpu as pltpu

GPAD = 128  # per-gate lane padding (one full vreg of lanes per gate)


def _nirs_lstm_kernel(x_ref, wih_ref, whh_ref, fc_ref, o_ref, xp_ref):
    # x_ref   : (T*B, E+1)   time-major, flattened, last column = 1.0 (bias)
    # wih_ref : (E+1, 4*GPAD) gate-fused [i|f|o|g], lane-padded, bias in last row
    # whh_ref : (GPAD, 4*GPAD) rows >= H and padded gate columns are zero
    # fc_ref  : (160, 16)    packed fc1/fc2 weights + biases (aligned offsets)
    # o_ref   : (B, C)
    # xp_ref  : (T*B, 4*GPAD) VMEM scratch for the hoisted input projection
    B = o_ref.shape[0]
    C = o_ref.shape[1]
    TB = x_ref.shape[0]
    T = TB // B
    G4 = wih_ref.shape[1]
    G = G4 // 4  # == GPAD

    # ---- Input projection for all timesteps at once (bias folded in via the
    # ones column).  Stored to VMEM scratch so it is not pinned in vregs
    # across the unrolled recurrence.
    xp_ref[...] = jnp.dot(x_ref[...], wih_ref[...],
                          preferred_element_type=jnp.float32)

    h = jnp.zeros((B, G), jnp.float32)
    c = jnp.zeros((B, G), jnp.float32)

    # ---- Recurrence: fully unrolled (T static & tiny); h/c stay in vregs.
    # Gate layout [i | f | o | g], each gate a whole 128-lane block.
    for t in range(T):
        gates = xp_ref[t * B:(t + 1) * B, :] + jnp.dot(
            h, whh_ref[...], preferred_element_type=jnp.float32)
        ifo = jax.nn.sigmoid(gates[:, :3 * G])      # one sigmoid slab (i,f,o)
        g_g = jnp.tanh(gates[:, 3 * G:])            # one tanh slab (g)
        i_g = ifo[:, 0 * G:1 * G]
        f_g = ifo[:, 1 * G:2 * G]
        o_g = ifo[:, 2 * G:3 * G]
        c = f_g * c + i_g * g_g
        h = o_g * jnp.tanh(c)

    # ---- FC head, once, after the recurrence.  Padded lanes of h are exactly
    # zero and padded w1 rows are zero, so no slicing of h is needed.
    w1 = fc_ref[0:G, :]              # (128, 16)
    b1 = fc_ref[G:G + 1, :]          # (1, 16)
    w2 = fc_ref[G + 8:G + 24, :]     # (16, 16), cols >= C are zero
    b2 = fc_ref[G + 24:G + 25, :]    # (1, 16)
    z1 = jnp.maximum(jnp.dot(h, w1, preferred_element_type=jnp.float32) + b1,
                     0.0)
    z2 = jnp.maximum(jnp.dot(z1, w2, preferred_element_type=jnp.float32) + b2,
                     0.0)
    o_ref[...] = z2[:, :C].astype(o_ref.dtype)


@partial(jax.jit, static_argnames=("num_classes",))
def nirs_lstm_forward(x, wih_aug, whh_pad, fc_buf, *, num_classes):
    """x: (B, T, E).  wih_aug/whh_pad/fc_buf are the packed, lane-aligned
    parameters produced by pack_params()."""
    B, T, E = x.shape
    # Time-major + ones column for the folded bias; flatten to (T*B, E+1).
    # All of this is cheap XLA layout work outside the kernel.
    x_aug = jnp.concatenate([x, jnp.ones((B, T, 1), x.dtype)], axis=-1)
    x_tm = jnp.transpose(x_aug, (1, 0, 2)).reshape(T * B, E + 1)
    G4 = wih_aug.shape[1]
    vmem = pl.BlockSpec(memory_space=pltpu.MemorySpace.VMEM)
    return pl.pallas_call(
        _nirs_lstm_kernel,
        out_shape=jax.ShapeDtypeStruct((B, num_classes), jnp.float32),
        in_specs=[vmem] * 4,
        out_specs=vmem,
        scratch_shapes=[pltpu.VMEM((T * B, G4), jnp.float32)],
    )(x_tm, wih_aug, whh_pad, fc_buf)


def pack_params(w_ih, w_hh, b, w1, b1, w2, b2):
    """Pack PyTorch-style fused LSTM params (gate order [i|f|g|o]) and the fc
    head into the kernel's lane-aligned layout.

      w_ih: (E, 4H)   w_hh: (H, 4H)   b: (4H,)  (= b_ih + b_hh)
      w1: (H, 16)  b1: (16,)  w2: (16, C)  b2: (C,)

    Returns:
      wih_aug: (E+1, 4*GPAD)  gate order [i|f|o|g], each gate padded to 128
               lanes with zeros; last row holds the (padded) bias.
      whh_pad: (GPAD, 4*GPAD) same column layout; rows >= H are zero.
      fc_buf : (160, 16)      w1 rows [0:H], b1 row 128, w2 rows [136:152]
               (cols >= C zero), b2 row 152 (cols >= C zero).
    """
    E = w_ih.shape[0]
    H = w_hh.shape[0]
    C = w2.shape[1]
    order = (0, 1, 3, 2)  # PyTorch [i, f, g, o] -> kernel [i, f, o, g]

    def pad_cols(w):  # (K, H) -> (K, GPAD), zero-padded
        return jnp.pad(w, ((0, 0), (0, GPAD - H)))

    wih_p = jnp.concatenate(
        [pad_cols(w_ih[:, k * H:(k + 1) * H]) for k in order], axis=1)
    whh_p = jnp.concatenate(
        [pad_cols(w_hh[:, k * H:(k + 1) * H]) for k in order], axis=1)
    whh_pad = jnp.pad(whh_p, ((0, GPAD - H), (0, 0)))            # (128, 512)
    b_p = jnp.concatenate(
        [jnp.pad(b[k * H:(k + 1) * H], (0, GPAD - H)) for k in order])
    wih_aug = jnp.concatenate([wih_p, b_p[None, :]], axis=0)     # (E+1, 512)

    fc_buf = jnp.zeros((GPAD + 32, 16), jnp.float32)             # (160, 16)
    fc_buf = fc_buf.at[0:H, :].set(w1)
    fc_buf = fc_buf.at[GPAD, :].set(b1)
    fc_buf = fc_buf.at[GPAD + 8:GPAD + 24, 0:C].set(w2)
    fc_buf = fc_buf.at[GPAD + 24, 0:C].set(b2)
    return wih_aug, whh_pad, fc_buf


def _reference_forward(x, w_ih, w_hh, b, w1, b1, w2, b2):
    """Pure-JAX reference matching PyTorch LSTM semantics (gate order i,f,g,o)."""
    B, T, E = x.shape
    H = w_hh.shape[0]

    def step(carry, x_t):
        h, c = carry
        gates = x_t @ w_ih + h @ w_hh + b
        i = jax.nn.sigmoid(gates[:, 0 * H:1 * H])
        f = jax.nn.sigmoid(gates[:, 1 * H:2 * H])
        g = jnp.tanh(gates[:, 2 * H:3 * H])
        o = jax.nn.sigmoid(gates[:, 3 * H:4 * H])
        c = f * c + i * g
        h = o * jnp.tanh(c)
        return (h, c), None

    h0 = jnp.zeros((B, H), jnp.float32)
    c0 = jnp.zeros((B, H), jnp.float32)
    (h, _), _ = jax.lax.scan(step, (h0, c0), jnp.swapaxes(x, 0, 1))
    z1 = jnp.maximum(h @ w1 + b1, 0.0)
    return jnp.maximum(z1 @ w2 + b2, 0.0)


if __name__ == "__main__":
    num_electrodes = 20
    hidden_size = 36
    num_classes = 3
    B, T = 4, 8

    key = jax.random.PRNGKey(0)
    keys = jax.random.split(key, 8)
    scale = hidden_size ** -0.5

    x = jax.random.normal(keys[0], (B, T, num_electrodes), jnp.float32)

    # LSTM params, gate-fused layout (columns = [i | f | g | o]); bias = b_ih + b_hh.
    w_ih = jax.random.uniform(keys[1], (num_electrodes, 4 * hidden_size),
                              jnp.float32, -scale, scale)
    w_hh = jax.random.uniform(keys[2], (hidden_size, 4 * hidden_size),
                              jnp.float32, -scale, scale)
    b = jax.random.uniform(keys[3], (4 * hidden_size,), jnp.float32,
                           -scale, scale)

    # fc1 / fc2 params, stored (in, out) so the kernel does x @ W + b.
    w1 = jax.random.uniform(keys[4], (hidden_size, 16), jnp.float32,
                            -scale, scale)
    b1 = jax.random.uniform(keys[5], (16,), jnp.float32, -scale, scale)
    w2 = jax.random.uniform(keys[6], (16, num_classes), jnp.float32,
                            -0.25, 0.25)
    b2 = jax.random.uniform(keys[7], (num_classes,), jnp.float32, -0.25, 0.25)

    wih_aug, whh_pad, fc_buf = pack_params(w_ih, w_hh, b, w1, b1, w2, b2)

    out = nirs_lstm_forward(x, wih_aug, whh_pad, fc_buf,
                            num_classes=num_classes)
    out = jax.block_until_ready(out)

    ref = _reference_forward(x, w_ih, w_hh, b, w1, b1, w2, b2)
    assert out.shape == (B, num_classes)
    assert jnp.allclose(out, ref, atol=1e-5, rtol=1e-5), "mismatch vs reference"

    print("KERNEL_OK")
</pallas_src>

<mosaic_0001>
module attributes {stable_mosaic.version = 11 : i64} {
  func.func @_nirs_lstm_kernel(%arg0: memref<32x21xf32, #tpu.memory_space<vmem>>, %arg1: memref<21x512xf32, #tpu.memory_space<vmem>>, %arg2: memref<128x512xf32, #tpu.memory_space<vmem>>, %arg3: memref<160x16xf32, #tpu.memory_space<vmem>>, %arg4: memref<4x3xf32, #tpu.memory_space<vmem>>, %arg5: memref<32x512xf32, #tpu.memory_space<vmem>>) attributes {dimension_semantics = [], scalar_prefetch = 0 : i64, scratch_operands = 1 : i64, tpu.core_type = #tpu.core_type<tc>} {
    %c0 = arith.constant 0 : index
    %c0_0 = arith.constant 0 : index
    %0 = vector.load %arg0[%c0, %c0_0] : memref<32x21xf32, #tpu.memory_space<vmem>>, vector<32x21xf32>
    %c0_1 = arith.constant 0 : index
    %c0_2 = arith.constant 0 : index
    %1 = vector.load %arg1[%c0_1, %c0_2] : memref<21x512xf32, #tpu.memory_space<vmem>>, vector<21x512xf32>
    %cst = arith.constant dense<0.000000e+00> : vector<32x512xf32>
    %2 = tpu.matmul %0, %1, %cst {dimension_numbers = #tpu.dot_dimension_numbers<[1], [0], [0], [1], [0, 0, 1, 1], [], []>} : vector<32x21xf32>, vector<21x512xf32>, vector<32x512xf32> -> vector<32x512xf32>
    %c0_3 = arith.constant 0 : index
    %c0_4 = arith.constant 0 : index
    %3 = vector.load %arg5[%c0_3, %c0_4] : memref<32x512xf32, #tpu.memory_space<vmem>>, vector<32x512xf32>
    tpu.vector_store %arg5[%c0_3, %c0_4], %2 {strides = array<i32>} : memref<32x512xf32, #tpu.memory_space<vmem>>, vector<32x512xf32>,
    %cst_5 = arith.constant 0.000000e+00 : f32
    %4 = vector.broadcast %cst_5 : f32 to vector<4x128xf32>
    %cst_6 = arith.constant 0.000000e+00 : f32
    %5 = vector.broadcast %cst_6 : f32 to vector<4x128xf32>
    %c0_7 = arith.constant 0 : index
    %c0_8 = arith.constant 0 : index
    %6 = vector.load %arg5[%c0_7, %c0_8] : memref<32x512xf32, #tpu.memory_space<vmem>>, vector<4x512xf32>
    %c0_9 = arith.constant 0 : index
    %c0_10 = arith.constant 0 : index
    %7 = vector.load %arg2[%c0_9, %c0_10] : memref<128x512xf32, #tpu.memory_space<vmem>>, vector<128x512xf32>
    %cst_11 = arith.constant dense<0.000000e+00> : vector<4x512xf32>
    %8 = tpu.matmul %4, %7, %cst_11 {dimension_numbers = #tpu.dot_dimension_numbers<[1], [0], [0], [1], [0, 0, 1, 1], [], []>} : vector<4x128xf32>, vector<128x512xf32>, vector<4x512xf32> -> vector<4x512xf32>
    %9 = arith.addf %6, %8 : vector<4x512xf32>
    %10 = vector.extract_strided_slice %9 {offsets = [0, 0], sizes = [4, 384], strides = [1, 1]} : vector<4x512xf32> to vector<4x384xf32>
    %11 = arith.negf %10 : vector<4x384xf32>
    %12 = math.exp %11 : vector<4x384xf32>
    %cst_12 = arith.constant 1.000000e+00 : f32
    %13 = vector.broadcast %cst_12 : f32 to vector<4x384xf32>
    %14 = arith.addf %13, %12 : vector<4x384xf32>
    %15 = arith.divf %13, %14 : vector<4x384xf32>
    %16 = vector.extract_strided_slice %9 {offsets = [0, 384], sizes = [4, 128], strides = [1, 1]} : vector<4x512xf32> to vector<4x128xf32>
    %17 = math.tanh %16 : vector<4x128xf32>
    %18 = vector.extract_strided_slice %15 {offsets = [0, 0], sizes = [4, 128], strides = [1, 1]} : vector<4x384xf32> to vector<4x128xf32>
    %19 = vector.extract_strided_slice %15 {offsets = [0, 128], sizes = [4, 128], strides = [1, 1]} : vector<4x384xf32> to vector<4x128xf32>
    %20 = vector.extract_strided_slice %15 {offsets = [0, 256], sizes = [4, 128], strides = [1, 1]} : vector<4x384xf32> to vector<4x128xf32>
    %21 = arith.mulf %19, %5 : vector<4x128xf32>
    %22 = arith.mulf %18, %17 : vector<4x128xf32>
    %23 = arith.addf %21, %22 : vector<4x128xf32>
    %24 = math.tanh %23 : vector<4x128xf32>
    %25 = arith.mulf %20, %24 : vector<4x128xf32>
    %c4 = arith.constant 4 : index
    %c0_13 = arith.constant 0 : index
    %26 = vector.load %arg5[%c4, %c0_13] : memref<32x512xf32, #tpu.memory_space<vmem>>, vector<4x512xf32>
    %c0_14 = arith.constant 0 : index
    %c0_15 = arith.constant 0 : index
    %27 = vector.load %arg2[%c0_14, %c0_15] : memref<128x512xf32, #tpu.memory_space<vmem>>, vector<128x512xf32>
    %cst_16 = arith.constant dense<0.000000e+00> : vector<4x512xf32>
    %28 = tpu.matmul %25, %27, %cst_16 {dimension_numbers = #tpu.dot_dimension_numbers<[1], [0], [0], [1], [0, 0, 1, 1], [], []>} : vector<4x128xf32>, vector<128x512xf32>, vector<4x512xf32> -> vector<4x512xf32>
    %29 = arith.addf %26, %28 : vector<4x512xf32>
    %30 = vector.extract_strided_slice %29 {offsets = [0, 0], sizes = [4, 384], strides = [1, 1]} : vector<4x512xf32> to vector<4x384xf32>
    %31 = arith.negf %30 : vector<4x384xf32>
    %32 = math.exp %31 : vector<4x384xf32>
    %cst_17 = arith.constant 1.000000e+00 : f32
    %33 = vector.broadcast %cst_17 : f32 to vector<4x384xf32>
    %34 = arith.addf %33, %32 : vector<4x384xf32>
    %35 = arith.divf %33, %34 : vector<4x384xf32>
    %36 = vector.extract_strided_slice %29 {offsets = [0, 384], sizes = [4, 128], strides = [1, 1]} : vector<4x512xf32> to vector<4x128xf32>
    %37 = math.tanh %36 : vector<4x128xf32>
    %38 = vector.extract_strided_slice %35 {offsets = [0, 0], sizes = [4, 128], strides = [1, 1]} : vector<4x384xf32> to vector<4x128xf32>
    %39 = vector.extract_strided_slice %35 {offsets = [0, 128], sizes = [4, 128], strides = [1, 1]} : vector<4x384xf32> to vector<4x128xf32>
    %40 = vector.extract_strided_slice %35 {offsets = [0, 256], sizes = [4, 128], strides = [1, 1]} : vector<4x384xf32> to vector<4x128xf32>
    %41 = arith.mulf %39, %23 : vector<4x128xf32>
    %42 = arith.mulf %38, %37 : vector<4x128xf32>
    %43 = arith.addf %41, %42 : vector<4x128xf32>
    %44 = math.tanh %43 : vector<4x128xf32>
    %45 = arith.mulf %40, %44 : vector<4x128xf32>
    %c8 = arith.constant 8 : index
    %c0_18 = arith.constant 0 : index
    %46 = vector.load %arg5[%c8, %c0_18] : memref<32x512xf32, #tpu.memory_space<vmem>>, vector<4x512xf32>
    %c0_19 = arith.constant 0 : index
    %c0_20 = arith.constant 0 : index
    %47 = vector.load %arg2[%c0_19, %c0_20] : memref<128x512xf32, #tpu.memory_space<vmem>>, vector<128x512xf32>
    %cst_21 = arith.constant dense<0.000000e+00> : vector<4x512xf32>
    %48 = tpu.matmul %45, %47, %cst_21 {dimension_numbers = #tpu.dot_dimension_numbers<[1], [0], [0], [1], [0, 0, 1, 1], [], []>} : vector<4x128xf32>, vector<128x512xf32>, vector<4x512xf32> -> vector<4x512xf32>
    %49 = arith.addf %46, %48 : vector<4x512xf32>
    %50 = vector.extract_strided_slice %49 {offsets = [0, 0], sizes = [4, 384], strides = [1, 1]} : vector<4x512xf32> to vector<4x384xf32>
    %51 = arith.negf %50 : vector<4x384xf32>
    %52 = math.exp %51 : vector<4x384xf32>
    %cst_22 = arith.constant 1.000000e+00 : f32
    %53 = vector.broadcast %cst_22 : f32 to vector<4x384xf32>
    %54 = arith.addf %53, %52 : vector<4x384xf32>
    %55 = arith.divf %53, %54 : vector<4x384xf32>
    %56 = vector.extract_strided_slice %49 {offsets = [0, 384], sizes = [4, 128], strides = [1, 1]} : vector<4x512xf32> to vector<4x128xf32>
    %57 = math.tanh %56 : vector<4x128xf32>
    %58 = vector.extract_strided_slice %55 {offsets = [0, 0], sizes = [4, 128], strides = [1, 1]} : vector<4x384xf32> to vector<4x128xf32>
    %59 = vector.extract_strided_slice %55 {offsets = [0, 128], sizes = [4, 128], strides = [1, 1]} : vector<4x384xf32> to vector<4x128xf32>
    %60 = vector.extract_strided_slice %55 {offsets = [0, 256], sizes = [4, 128], strides = [1, 1]} : vector<4x384xf32> to vector<4x128xf32>
    %61 = arith.mulf %59, %43 : vector<4x128xf32>
    %62 = arith.mulf %58, %57 : vector<4x128xf32>
    %63 = arith.addf %61, %62 : vector<4x128xf32>
    %64 = math.tanh %63 : vector<4x128xf32>
    %65 = arith.mulf %60, %64 : vector<4x128xf32>
    %c12 = arith.constant 12 : index
    %c0_23 = arith.constant 0 : index
    %66 = vector.load %arg5[%c12, %c0_23] : memref<32x512xf32, #tpu.memory_space<vmem>>, vector<4x512xf32>
    %c0_24 = arith.constant 0 : index
    %c0_25 = arith.constant 0 : index
    %67 = vector.load %arg2[%c0_24, %c0_25] : memref<128x512xf32, #tpu.memory_space<vmem>>, vector<128x512xf32>
    %cst_26 = arith.constant dense<0.000000e+00> : vector<4x512xf32>
    %68 = tpu.matmul %65, %67, %cst_26 {dimension_numbers = #tpu.dot_dimension_numbers<[1], [0], [0], [1], [0, 0, 1, 1], [], []>} : vector<4x128xf32>, vector<128x512xf32>, vector<4x512xf32> -> vector<4x512xf32>
    %69 = arith.addf %66, %68 : vector<4x512xf32>
    %70 = vector.extract_strided_slice %69 {offsets = [0, 0], sizes = [4, 384], strides = [1, 1]} : vector<4x512xf32> to vector<4x384xf32>
    %71 = arith.negf %70 : vector<4x384xf32>
    %72 = math.exp %71 : vector<4x384xf32>
    %cst_27 = arith.constant 1.000000e+00 : f32
    %73 = vector.broadcast %cst_27 : f32 to vector<4x384xf32>
    %74 = arith.addf %73, %72 : vector<4x384xf32>
    %75 = arith.divf %73, %74 : vector<4x384xf32>
    %76 = vector.extract_strided_slice %69 {offsets = [0, 384], sizes = [4, 128], strides = [1, 1]} : vector<4x512xf32> to vector<4x128xf32>
    %77 = math.tanh %76 : vector<4x128xf32>
    %78 = vector.extract_strided_slice %75 {offsets = [0, 0], sizes = [4, 128], strides = [1, 1]} : vector<4x384xf32> to vector<4x128xf32>
    %79 = vector.extract_strided_slice %75 {offsets = [0, 128], sizes = [4, 128], strides = [1, 1]} : vector<4x384xf32> to vector<4x128xf32>
    %80 = vector.extract_strided_slice %75 {offsets = [0, 256], sizes = [4, 128], strides = [1, 1]} : vector<4x384xf32> to vector<4x128xf32>
    %81 = arith.mulf %79, %63 : vector<4x128xf32>
    %82 = arith.mulf %78, %77 : vector<4x128xf32>
    %83 = arith.addf %81, %82 : vector<4x128xf32>
    %84 = math.tanh %83 : vector<4x128xf32>
    %85 = arith.mulf %80, %84 : vector<4x128xf32>
    %c16 = arith.constant 16 : index
    %c0_28 = arith.constant 0 : index
    %86 = vector.load %arg5[%c16, %c0_28] : memref<32x512xf32, #tpu.memory_space<vmem>>, vector<4x512xf32>
    %c0_29 = arith.constant 0 : index
    %c0_30 = arith.constant 0 : index
    %87 = vector.load %arg2[%c0_29, %c0_30] : memref<128x512xf32, #tpu.memory_space<vmem>>, vector<128x512xf32>
    %cst_31 = arith.constant dense<0.000000e+00> : vector<4x512xf32>
    %88 = tpu.matmul %85, %87, %cst_31 {dimension_numbers = #tpu.dot_dimension_numbers<[1], [0], [0], [1], [0, 0, 1, 1], [], []>} : vector<4x128xf32>, vector<128x512xf32>, vector<4x512xf32> -> vector<4x512xf32>
    %89 = arith.addf %86, %88 : vector<4x512xf32>
    %90 = vector.extract_strided_slice %89 {offsets = [0, 0], sizes = [4, 384], strides = [1, 1]} : vector<4x512xf32> to vector<4x384xf32>
    %91 = arith.negf %90 : vector<4x384xf32>
    %92 = math.exp %91 : vector<4x384xf32>
    %cst_32 = arith.constant 1.000000e+00 : f32
    %93 = vector.broadcast %cst_32 : f32 to vector<4x384xf32>
    %94 = arith.addf %93, %92 : vector<4x384xf32>
    %95 = arith.divf %93, %94 : vector<4x384xf32>
    %96 = vector.extract_strided_slice %89 {offsets = [0, 384], sizes = [4, 128], strides = [1, 1]} : vector<4x512xf32> to vector<4x128xf32>
    %97 = math.tanh %96 : vector<4x128xf32>
    %98 = vector.extract_strided_slice %95 {offsets = [0, 0], sizes = [4, 128], strides = [1, 1]} : vector<4x384xf32> to vector<4x128xf32>
    %99 = vector.extract_strided_slice %95 {offsets = [0, 128], sizes = [4, 128], strides = [1, 1]} : vector<4x384xf32> to vector<4x128xf32>
    %100 = vector.extract_strided_slice %95 {offsets = [0, 256], sizes = [4, 128], strides = [1, 1]} : vector<4x384xf32> to vector<4x128xf32>
    %101 = arith.mulf %99, %83 : vector<4x128xf32>
    %102 = arith.mulf %98, %97 : vector<4x128xf32>
    %103 = arith.addf %101, %102 : vector<4x128xf32>
    %104 = math.tanh %103 : vector<4x128xf32>
    %105 = arith.mulf %100, %104 : vector<4x128xf32>
    %c20 = arith.constant 20 : index
    %c0_33 = arith.constant 0 : index
    %106 = vector.load %arg5[%c20, %c0_33] : memref<32x512xf32, #tpu.memory_space<vmem>>, vector<4x512xf32>
    %c0_34 = arith.constant 0 : index
    %c0_35 = arith.constant 0 : index
    %107 = vector.load %arg2[%c0_34, %c0_35] : memref<128x512xf32, #tpu.memory_space<vmem>>, vector<128x512xf32>
    %cst_36 = arith.constant dense<0.000000e+00> : vector<4x512xf32>
    %108 = tpu.matmul %105, %107, %cst_36 {dimension_numbers = #tpu.dot_dimension_numbers<[1], [0], [0], [1], [0, 0, 1, 1], [], []>} : vector<4x128xf32>, vector<128x512xf32>, vector<4x512xf32> -> vector<4x512xf32>
    %109 = arith.addf %106, %108 : vector<4x512xf32>
    %110 = vector.extract_strided_slice %109 {offsets = [0, 0], sizes = [4, 384], strides = [1, 1]} : vector<4x512xf32> to vector<4x384xf32>
    %111 = arith.negf %110 : vector<4x384xf32>
    %112 = math.exp %111 : vector<4x384xf32>
    %cst_37 = arith.constant 1.000000e+00 : f32
    %113 = vector.broadcast %cst_37 : f32 to vector<4x384xf32>
    %114 = arith.addf %113, %112 : vector<4x384xf32>
    %115 = arith.divf %113, %114 : vector<4x384xf32>
    %116 = vector.extract_strided_slice %109 {offsets = [0, 384], sizes = [4, 128], strides = [1, 1]} : vector<4x512xf32> to vector<4x128xf32>
    %117 = math.tanh %116 : vector<4x128xf32>
    %118 = vector.extract_strided_slice %115 {offsets = [0, 0], sizes = [4, 128], strides = [1, 1]} : vector<4x384xf32> to vector<4x128xf32>
    %119 = vector.extract_strided_slice %115 {offsets = [0, 128], sizes = [4, 128], strides = [1, 1]} : vector<4x384xf32> to vector<4x128xf32>
    %120 = vector.extract_strided_slice %115 {offsets = [0, 256], sizes = [4, 128], strides = [1, 1]} : vector<4x384xf32> to vector<4x128xf32>
    %121 = arith.mulf %119, %103 : vector<4x128xf32>
    %122 = arith.mulf %118, %117 : vector<4x128xf32>
    %123 = arith.addf %121, %122 : vector<4x128xf32>
    %124 = math.tanh %123 : vector<4x128xf32>
    %125 = arith.mulf %120, %124 : vector<4x128xf32>
    %c24 = arith.constant 24 : index
    %c0_38 = arith.constant 0 : index
    %126 = vector.load %arg5[%c24, %c0_38] : memref<32x512xf32, #tpu.memory_space<vmem>>, vector<4x512xf32>
    %c0_39 = arith.constant 0 : index
    %c0_40 = arith.constant 0 : index
    %127 = vector.load %arg2[%c0_39, %c0_40] : memref<128x512xf32, #tpu.memory_space<vmem>>, vector<128x512xf32>
    %cst_41 = arith.constant dense<0.000000e+00> : vector<4x512xf32>
    %128 = tpu.matmul %125, %127, %cst_41 {dimension_numbers = #tpu.dot_dimension_numbers<[1], [0], [0], [1], [0, 0, 1, 1], [], []>} : vector<4x128xf32>, vector<128x512xf32>, vector<4x512xf32> -> vector<4x512xf32>
    %129 = arith.addf %126, %128 : vector<4x512xf32>
    %130 = vector.extract_strided_slice %129 {offsets = [0, 0], sizes = [4, 384], strides = [1, 1]} : vector<4x512xf32> to vector<4x384xf32>
    %131 = arith.negf %130 : vector<4x384xf32>
    %132 = math.exp %131 : vector<4x384xf32>
    %cst_42 = arith.constant 1.000000e+00 : f32
    %133 = vector.broadcast %cst_42 : f32 to vector<4x384xf32>
    %134 = arith.addf %133, %132 : vector<4x384xf32>
    %135 = arith.divf %133, %134 : vector<4x384xf32>
    %136 = vector.extract_strided_slice %129 {offsets = [0, 384], sizes = [4, 128], strides = [1, 1]} : vector<4x512xf32> to vector<4x128xf32>
    %137 = math.tanh %136 : vector<4x128xf32>
    %138 = vector.extract_strided_slice %135 {offsets = [0, 0], sizes = [4, 128], strides = [1, 1]} : vector<4x384xf32> to vector<4x128xf32>
    %139 = vector.extract_strided_slice %135 {offsets = [0, 128], sizes = [4, 128], strides = [1, 1]} : vector<4x384xf32> to vector<4x128xf32>
    %140 = vector.extract_strided_slice %135 {offsets = [0, 256], sizes = [4, 128], strides = [1, 1]} : vector<4x384xf32> to vector<4x128xf32>
    %141 = arith.mulf %139, %123 : vector<4x128xf32>
    %142 = arith.mulf %138, %137 : vector<4x128xf32>
    %143 = arith.addf %141, %142 : vector<4x128xf32>
    %144 = math.tanh %143 : vector<4x128xf32>
    %145 = arith.mulf %140, %144 : vector<4x128xf32>
    %c28 = arith.constant 28 : index
    %c0_43 = arith.constant 0 : index
    %146 = vector.load %arg5[%c28, %c0_43] : memref<32x512xf32, #tpu.memory_space<vmem>>, vector<4x512xf32>
    %c0_44 = arith.constant 0 : index
    %c0_45 = arith.constant 0 : index
    %147 = vector.load %arg2[%c0_44, %c0_45] : memref<128x512xf32, #tpu.memory_space<vmem>>, vector<128x512xf32>
    %cst_46 = arith.constant dense<0.000000e+00> : vector<4x512xf32>
    %148 = tpu.matmul %145, %147, %cst_46 {dimension_numbers = #tpu.dot_dimension_numbers<[1], [0], [0], [1], [0, 0, 1, 1], [], []>} : vector<4x128xf32>, vector<128x512xf32>, vector<4x512xf32> -> vector<4x512xf32>
    %149 = arith.addf %146, %148 : vector<4x512xf32>
    %150 = vector.extract_strided_slice %149 {offsets = [0, 0], sizes = [4, 384], strides = [1, 1]} : vector<4x512xf32> to vector<4x384xf32>
    %151 = arith.negf %150 : vector<4x384xf32>
    %152 = math.exp %151 : vector<4x384xf32>
    %cst_47 = arith.constant 1.000000e+00 : f32
    %153 = vector.broadcast %cst_47 : f32 to vector<4x384xf32>
    %154 = arith.addf %153, %152 : vector<4x384xf32>
    %155 = arith.divf %153, %154 : vector<4x384xf32>
    %156 = vector.extract_strided_slice %149 {offsets = [0, 384], sizes = [4, 128], strides = [1, 1]} : vector<4x512xf32> to vector<4x128xf32>
    %157 = math.tanh %156 : vector<4x128xf32>
    %158 = vector.extract_strided_slice %155 {offsets = [0, 0], sizes = [4, 128], strides = [1, 1]} : vector<4x384xf32> to vector<4x128xf32>
    %159 = vector.extract_strided_slice %155 {offsets = [0, 128], sizes = [4, 128], strides = [1, 1]} : vector<4x384xf32> to vector<4x128xf32>
    %160 = vector.extract_strided_slice %155 {offsets = [0, 256], sizes = [4, 128], strides = [1, 1]} : vector<4x384xf32> to vector<4x128xf32>
    %161 = arith.mulf %159, %143 : vector<4x128xf32>
    %162 = arith.mulf %158, %157 : vector<4x128xf32>
    %163 = arith.addf %161, %162 : vector<4x128xf32>
    %164 = math.tanh %163 : vector<4x128xf32>
    %165 = arith.mulf %160, %164 : vector<4x128xf32>
    %c0_48 = arith.constant 0 : index
    %c0_49 = arith.constant 0 : index
    %166 = vector.load %arg3[%c0_48, %c0_49] : memref<160x16xf32, #tpu.memory_space<vmem>>, vector<128x16xf32>
    %c128 = arith.constant 128 : index
    %c0_50 = arith.constant 0 : index
    %167 = vector.load %arg3[%c128, %c0_50] : memref<160x16xf32, #tpu.memory_space<vmem>>, vector<1x16xf32>
    %c136 = arith.constant 136 : index
    %c0_51 = arith.constant 0 : index
    %168 = vector.load %arg3[%c136, %c0_51] : memref<160x16xf32, #tpu.memory_space<vmem>>, vector<16x16xf32>
    %c152 = arith.constant 152 : index
    %c0_52 = arith.constant 0 : index
    %169 = vector.load %arg3[%c152, %c0_52] : memref<160x16xf32, #tpu.memory_space<vmem>>, vector<1x16xf32>
    %cst_53 = arith.constant dense<0.000000e+00> : vector<4x16xf32>
    %170 = tpu.matmul %165, %166, %cst_53 {dimension_numbers = #tpu.dot_dimension_numbers<[1], [0], [0], [1], [0, 0, 1, 1], [], []>} : vector<4x128xf32>, vector<128x16xf32>, vector<4x16xf32> -> vector<4x16xf32>
    %171 = vector.broadcast %167 : vector<1x16xf32> to vector<4x16xf32>
    %172 = arith.addf %170, %171 : vector<4x16xf32>
    %cst_54 = arith.constant 0.000000e+00 : f32
    %173 = vector.broadcast %cst_54 : f32 to vector<4x16xf32>
    %174 = arith.maximumf %172, %173 : vector<4x16xf32>
    %cst_55 = arith.constant dense<0.000000e+00> : vector<4x16xf32>
    %175 = tpu.matmul %174, %168, %cst_55 {dimension_numbers = #tpu.dot_dimension_numbers<[1], [0], [0], [1], [0, 0, 1, 1], [], []>} : vector<4x16xf32>, vector<16x16xf32>, vector<4x16xf32> -> vector<4x16xf32>
    %176 = vector.broadcast %169 : vector<1x16xf32> to vector<4x16xf32>
    %177 = arith.addf %175, %176 : vector<4x16xf32>
    %cst_56 = arith.constant 0.000000e+00 : f32
    %178 = vector.broadcast %cst_56 : f32 to vector<4x16xf32>
    %179 = arith.maximumf %177, %178 : vector<4x16xf32>
    %180 = vector.extract_strided_slice %179 {offsets = [0, 0], sizes = [4, 3], strides = [1, 1]} : vector<4x16xf32> to vector<4x3xf32>
    %c0_57 = arith.constant 0 : index
    %c0_58 = arith.constant 0 : index
    %181 = vector.load %arg4[%c0_57, %c0_58] : memref<4x3xf32, #tpu.memory_space<vmem>>, vector<4x3xf32>
    tpu.vector_store %arg4[%c0_57, %c0_58], %180 {strides = array<i32>} : memref<4x3xf32, #tpu.memory_space<vmem>>, vector<4x3xf32>,
    return
  }
}

</mosaic_0001>

<llo_original>
// kernel: nirs_lstm_forward.1
$region0: #{nirs_lstm_forward.1}
  #allocation0 [shape = 'u32[]', space=smem, size = 0x4, offset = 0x4, fixed_abs, tag = 'smem constant byte address 0x4 - core index']
  #allocation1 [shape = 'u32[144,128]{1,0:T(1,128)}', space=vmem, size = 0x12000, scoped, tag = 'internal scratch']
  #allocation2 [shape = 'f32[32,512]{1,0:T(8,128)}', space=vmem, size = 0x10000, scoped, tag = 'scratch operand']
  %s0 = inlined_call_operand.vmem [shape: f32[32,21], index: 0, kind: input, shape index: {}]
  %s1 = inlined_call_operand.vmem [shape: f32[21,512], index: 1, kind: input, shape index: {}]
  %s2 = inlined_call_operand.hbm [shape: f32[128,512], index: 2, kind: input, shape index: {}]
  %s3 = inlined_call_operand.vmem [shape: f32[160,16], index: 3, kind: input, shape index: {}]
  %s4 = inlined_call_operand.hbm [shape: f32[4,3], index: 4, kind: output, shape index: {}]
  %s5 = sld [smem:[#allocation0]]
  $region30: #{nirs_lstm_forward.1} parent=0
    _
  %s7 = ssub.s32 1, %s5
  %s8 = scalar_select 0, %s7, %s5
  $region1: #{nirs_lstm_forward.1} parent=0
    #allocation3 [shape = 'u8[262144]{0}', space=vmem, size = 0x40000, scoped, tag = 'input window, operand 2, single buffered']
    #allocation4 [shape = 's32[1]{0}', space=sflag, size = 0x4, scoped, tag = 'scoped memory for nirs_lstm_forward.1']
    #allocation5 [shape = 's32[1]{0}', space=sflag, size = 0x4, scoped, tag = 'scoped memory for nirs_lstm_forward.1']
    #allocation6 [shape = 'u8[2048]{0}', space=vmem, size = 0x800, scoped, tag = 'output window, operand 0, single buffered']
    %9 = vsyncpa [#allocation4], 0
    %10 = vsyncpa [#allocation5], 0
    // Predicated region
    $region2: #{nirs_lstm_forward.1} parent=1 // pred_check
      _
    $region3: #{nirs_lstm_forward.1} parent=1 // pred_check_branch
      %12 = sbr.rel (0) target = $region5
    $region4: #{nirs_lstm_forward.1} parent=1 // pred_region
      _
    $region5: #{nirs_lstm_forward.1} parent=1 // pred_fallthru
      _
    // Predicated region
    $region6: #{nirs_lstm_forward.1} parent=1 // pred_check
      _
    $region7: #{nirs_lstm_forward.1} parent=1 // pred_check_branch
      %14 = sbr.rel (0) target = $region9
    $region8: #{nirs_lstm_forward.1} parent=1 // pred_region
      _
    $region9: #{nirs_lstm_forward.1} parent=1 // pred_fallthru
      _
    // Predicated region
    $region10: #{nirs_lstm_forward.1} parent=1 // pred_check
      _
    $region11: #{nirs_lstm_forward.1} parent=1 // pred_check_branch
      %16 = sbr.rel (0) target = $region13
    $region12: #{nirs_lstm_forward.1} parent=1 // pred_region
      %s18 = ssub.s32 8192, 8192
      %19 = vsyncadd [#allocation4], %s18
      %s20 = sshll.u32 [#allocation3], 4
      %s21 = int_to_ptr.vmem [resolvable:$true] %s20
      %26 = dma.hbm_to_vmem [thread:$0]  %s2, 8192, %s21, [#allocation4], 512, 512, 32
    $region13: #{nirs_lstm_forward.1} parent=1 // pred_fallthru
      _
    // Predicated region
    $region14: #{nirs_lstm_forward.1} parent=1 // pred_check
      _
    $region15: #{nirs_lstm_forward.1} parent=1 // pred_check_branch
      %28 = sbr.rel (0) target = $region17
    $region16: #{nirs_lstm_forward.1} parent=1 // pred_region
      _
    $region17: #{nirs_lstm_forward.1} parent=1 // pred_fallthru
      _
    // Predicated region
    $region18: #{nirs_lstm_forward.1} parent=1 // pred_check
      _
    $region19: #{nirs_lstm_forward.1} parent=1 // pred_check_branch
      %30 = sbr.rel (0) target = $region21
    $region20: #{nirs_lstm_forward.1} parent=1 // pred_region
      %31 = dma.done [#allocation4], 8192
    $region21: #{nirs_lstm_forward.1} parent=1 // pred_fallthru
      _
    %v32 = vld [vmem:[%s0] sm:$0xff]
    %v33 = vld [vmem:[%s0 + $0x8] sm:$0xff]
    %v34 = vld [vmem:[%s0 + $0x10] sm:$0xff]
    %v35 = vld [vmem:[%s0 + $0x18] sm:$0xff]
    %v36 = vld [vmem:[%s1] sm:$0xff]
    %v37 = vld [vmem:[%s1 + $0x8] sm:$0xff]
    %v38 = vld [vmem:[%s1 + $0x10] sm:$0xff]
    %v39 = vld [vmem:[%s1 + $0x18] sm:$0xff]
    %v40 = vld [vmem:[%s1 + $0x20] sm:$0xff]
    %v41 = vld [vmem:[%s1 + $0x28] sm:$0xff]
    %v42 = vld [vmem:[%s1 + $0x30] sm:$0xff]
    %v43 = vld [vmem:[%s1 + $0x38] sm:$0xff]
    %v44 = vld [vmem:[%s1 + $0x40] sm:$0x1f]
    %v45 = vld [vmem:[%s1 + $0x48] sm:$0x1f]
    %v46 = vld [vmem:[%s1 + $0x50] sm:$0x1f]
    %v47 = vld [vmem:[%s1 + $0x58] sm:$0x1f]
    %vm48 = vcmask 171008
    %v50 = vsel %vm48, %v32, 0
    %v53 = vsel %vm48, %v33, 0
    %v56 = vsel %vm48, %v34, 0
    %v59 = vsel %vm48, %v35, 0
    %vm61 = vcmask 1044480
    %v63 = vsel %vm61, %v44, 0
    %v66 = vsel %vm61, %v45, 0
    %v69 = vsel %vm61, %v46, 0
    %v72 = vsel %vm61, %v47, 0
    %74 = vmatprep.subr.mxu0 0.0
    %75 = vmatpush1.msra.mxu0 0.0
    %76 = vmatprep.subr.mxu0 0.0
    %77 = vmatpush1.msra.mxu0 0.0
    %78 = vmatprep.subr.mxu0 0.0
    %79 = vmatpush1.msra.mxu0 0.0
    %80 = vmatprep.subr.mxu0 0.0
    %81 = vmatpush1.msra.mxu0 0.0
    %82 = vmatprep.subr.mxu0 0.0
    %83 = vmatpush1.msra.mxu0 0.0
    %84 = vmatprep.subr.mxu0 0.0
    %85 = vmatpush1.msra.mxu0 0.0
    %86 = vmatprep.subr.mxu0 0.0
    %87 = vmatpush1.msra.mxu0 0.0
    %88 = vmatprep.subr.mxu0 0.0
    %89 = vmatpush1.msra.mxu0 0.0
    %90 = vmatprep.subr.mxu0 0.0
    %91 = vmatpush1.msra.mxu0 0.0
    %92 = vmatprep.subr.mxu0 0.0
    %93 = vmatpush1.msra.mxu0 0.0
    %94 = vmatprep.subr.mxu0 0.0
    %95 = vmatpush1.msra.mxu0 0.0
    %96 = vmatprep.subr.mxu0 0.0
    %97 = vmatpush1.msra.mxu0 0.0
    %98 = vmatprep.subr.mxu0 0.0
    %99 = vmatpush1.msra.mxu0 0.0
    %100 = vmatprep.subr.mxu0 %v66
    %101 = vmatpush1.msra.mxu0 %v63
    %102 = vmatprep.subr.mxu0 %v41
    %103 = vmatpush1.msra.mxu0 %v40
    %104 = vmatprep.subr.mxu0 %v37
    %105 = vmatpush1.msra.mxu0 %v36
    %106 = vmatprep.subr.mxu0 0.0
    %107 = vmatpush2.msra.mxu0 0.0
    %108 = vmatprep.subr.mxu0 0.0
    %109 = vmatpush2.msra.mxu0 0.0
    %110 = vmatprep.subr.mxu0 0.0
    %111 = vmatpush2.msra.mxu0 0.0
    %112 = vmatprep.subr.mxu0 0.0
    %113 = vmatpush2.msra.mxu0 0.0
    %114 = vmatprep.subr.mxu0 0.0
    %115 = vmatpush2.msra.mxu0 0.0
    %116 = vmatprep.subr.mxu0 0.0
    %117 = vmatpush2.msra.mxu0 0.0
    %118 = vmatprep.subr.mxu0 0.0
    %119 = vmatpush2.msra.mxu0 0.0
    %120 = vmatprep.subr.mxu0 0.0
    %121 = vmatpush2.msra.mxu0 0.0
    %122 = vmatprep.subr.mxu0 0.0
    %123 = vmatpush2.msra.mxu0 0.0
    %124 = vmatprep.subr.mxu0 0.0
    %125 = vmatpush2.msra.mxu0 0.0
    %126 = vmatprep.subr.mxu0 0.0
    %127 = vmatpush2.msra.mxu0 0.0
    %128 = vmatprep.subr.mxu0 0.0
    %129 = vmatpush2.msra.mxu0 0.0
    %130 = vmatprep.subr.mxu0 0.0
    %131 = vmatpush2.msra.mxu0 0.0
    %132 = vmatprep.subr.mxu0 0.0
    %133 = vmatpush2.msra.mxu0 0.0
    %134 = vmatprep.subr.mxu0 0.0
    %135 = vmatpush2.msra.mxu0 0.0
    %136 = vmatprep.subr.mxu0 0.0
    %137 = vmatpush2.msra.mxu0 0.0
    %138 = vmatprep.mubr.f32.mxu0 0.0
    %139 = vmatmul.mubr.f32.gmra.mxu0 %v50
    %v140 = vpop.f32.mrf.mxu0
    %v141 = vadd.f32 0.0, %v140
    %v142 = vpop.f32.mrf.mxu0
    %v143 = vadd.f32 0.0, %v142
    %144 = vmatprep.mubr.f32.mxu0 0.0
    %145 = vmatmul.mubr.f32.gmra.mxu0 %v53
    %v146 = vpop.f32.mrf.mxu0
    %v147 = vadd.f32 0.0, %v146
    %v148 = vpop.f32.mrf.mxu0
    %v149 = vadd.f32 0.0, %v148
    %150 = vmatprep.mubr.f32.mxu0 0.0
    %151 = vmatmul.mubr.f32.gmra.mxu0 %v56
    %v152 = vpop.f32.mrf.mxu0
    %v153 = vadd.f32 0.0, %v152
    %v154 = vpop.f32.mrf.mxu0
    %v155 = vadd.f32 0.0, %v154
    %156 = vmatprep.mubr.f32.mxu0 0.0
    %157 = vmatmul.mubr.f32.gmra.mxu0 %v59
    %v158 = vpop.f32.mrf.mxu0
    %v159 = vadd.f32 0.0, %v158
    %v160 = vpop.f32.mrf.mxu0
    %v161 = vadd.f32 0.0, %v160
    %162 = vdwg.mxu0
    %163 = vmatprep.subr.mxu0 0.0
    %164 = vmatpush1.msra.mxu0 0.0
    %165 = vmatprep.subr.mxu0 0.0
    %166 = vmatpush1.msra.mxu0 0.0
    %167 = vmatprep.subr.mxu0 0.0
    %168 = vmatpush1.msra.mxu0 0.0
    %169 = vmatprep.subr.mxu0 0.0
    %170 = vmatpush1.msra.mxu0 0.0
    %171 = vmatprep.subr.mxu0 0.0
    %172 = vmatpush1.msra.mxu0 0.0
    %173 = vmatprep.subr.mxu0 0.0
    %174 = vmatpush1.msra.mxu0 0.0
    %175 = vmatprep.subr.mxu0 0.0
    %176 = vmatpush1.msra.mxu0 0.0
    %177 = vmatprep.subr.mxu0 0.0
    %178 = vmatpush1.msra.mxu0 0.0
    %179 = vmatprep.subr.mxu0 0.0
    %180 = vmatpush1.msra.mxu0 0.0
    %181 = vmatprep.subr.mxu0 0.0
    %182 = vmatpush1.msra.mxu0 0.0
    %183 = vmatprep.subr.mxu0 0.0
    %184 = vmatpush1.msra.mxu0 0.0
    %185 = vmatprep.subr.mxu0 0.0
    %186 = vmatpush1.msra.mxu0 0.0
    %187 = vmatprep.subr.mxu0 0.0
    %188 = vmatpush1.msra.mxu0 0.0
    %189 = vmatprep.subr.mxu0 %v72
    %190 = vmatpush1.msra.mxu0 %v69
    %191 = vmatprep.subr.mxu0 %v43
    %192 = vmatpush1.msra.mxu0 %v42
    %193 = vmatprep.subr.mxu0 %v39
    %194 = vmatpush1.msra.mxu0 %v38
    %195 = vmatprep.subr.mxu0 0.0
    %196 = vmatpush2.msra.mxu0 0.0
    %197 = vmatprep.subr.mxu0 0.0
    %198 = vmatpush2.msra.mxu0 0.0
    %199 = vmatprep.subr.mxu0 0.0
    %200 = vmatpush2.msra.mxu0 0.0
    %201 = vmatprep.subr.mxu0 0.0
    %202 = vmatpush2.msra.mxu0 0.0
    %203 = vmatprep.subr.mxu0 0.0
    %204 = vmatpush2.msra.mxu0 0.0
    %205 = vmatprep.subr.mxu0 0.0
    %206 = vmatpush2.msra.mxu0 0.0
    %207 = vmatprep.subr.mxu0 0.0
    %208 = vmatpush2.msra.mxu0 0.0
    %209 = vmatprep.subr.mxu0 0.0
    %210 = vmatpush2.msra.mxu0 0.0
    %211 = vmatprep.subr.mxu0 0.0
    %212 = vmatpush2.msra.mxu0 0.0
    %213 = vmatprep.subr.mxu0 0.0
    %214 = vmatpush2.msra.mxu0 0.0
    %215 = vmatprep.subr.mxu0 0.0
    %216 = vmatpush2.msra.mxu0 0.0
    %217 = vmatprep.subr.mxu0 0.0
    %218 = vmatpush2.msra.mxu0 0.0
    %219 = vmatprep.subr.mxu0 0.0
    %220 = vmatpush2.msra.mxu0 0.0
    %221 = vmatprep.subr.mxu0 0.0
    %222 = vmatpush2.msra.mxu0 0.0
    %223 = vmatprep.subr.mxu0 0.0
    %224 = vmatpush2.msra.mxu0 0.0
    %225 = vmatprep.subr.mxu0 0.0
    %226 = vmatpush2.msra.mxu0 0.0
    %227 = vmatprep.mubr.f32.mxu0 0.0
    %228 = vmatmul.mubr.f32.gmra.mxu0 %v50
    %v229 = vpop.f32.mrf.mxu0
    %v230 = vadd.f32 0.0, %v229
    %v231 = vpop.f32.mrf.mxu0
    %v232 = vadd.f32 0.0, %v231
    %233 = vmatprep.mubr.f32.mxu0 0.0
    %234 = vmatmul.mubr.f32.gmra.mxu0 %v53
    %v235 = vpop.f32.mrf.mxu0
    %v236 = vadd.f32 0.0, %v235
    %v237 = vpop.f32.mrf.mxu0
    %v238 = vadd.f32 0.0, %v237
    %239 = vmatprep.mubr.f32.mxu0 0.0
    %240 = vmatmul.mubr.f32.gmra.mxu0 %v56
    %v241 = vpop.f32.mrf.mxu0
    %v242 = vadd.f32 0.0, %v241
    %v243 = vpop.f32.mrf.mxu0
    %v244 = vadd.f32 0.0, %v243
    %245 = vmatprep.mubr.f32.mxu0 0.0
    %246 = vmatmul.mubr.f32.gmra.mxu0 %v59
    %v247 = vpop.f32.mrf.mxu0
    %v248 = vadd.f32 0.0, %v247
    %v249 = vpop.f32.mrf.mxu0
    %v250 = vadd.f32 0.0, %v249
    %251 = vdwg.mxu0
    %252 = vst [vmem:[#allocation2] sm:$0xff] %v141
    %253 = vst [vmem:[#allocation2 + $0x8] sm:$0xff] %v143
    %254 = vst [vmem:[#allocation2 + $0x10] sm:$0xff] %v230
    %255 = vst [vmem:[#allocation2 + $0x18] sm:$0xff] %v232
    %256 = vst [vmem:[#allocation2 + $0x20] sm:$0xff] %v147
    %257 = vst [vmem:[#allocation2 + $0x28] sm:$0xff] %v149
    %258 = vst [vmem:[#allocation2 + $0x30] sm:$0xff] %v236
    %259 = vst [vmem:[#allocation2 + $0x38] sm:$0xff] %v238
    %260 = vst [vmem:[#allocation2 + $0x40] sm:$0xff] %v153
    %261 = vst [vmem:[#allocation2 + $0x48] sm:$0xff] %v155
    %262 = vst [vmem:[#allocation2 + $0x50] sm:$0xff] %v242
    %263 = vst [vmem:[#allocation2 + $0x58] sm:$0xff] %v244
    %264 = vst [vmem:[#allocation2 + $0x60] sm:$0xff] %v159
    %265 = vst [vmem:[#allocation2 + $0x68] sm:$0xff] %v161
    %266 = vst [vmem:[#allocation2 + $0x70] sm:$0xff] %v248
    %267 = vst [vmem:[#allocation2 + $0x78] sm:$0xff] %v250
    %v268 = vld [vmem:[#allocation2] sm:$0xf]
    %v269 = vld [vmem:[#allocation2 + $0x8] sm:$0xf]
    %v270 = vld [vmem:[#allocation2 + $0x10] sm:$0xf]
    %v271 = vld [vmem:[#allocation2 + $0x18] sm:$0xf]
    %v272 = vld [vmem:[#allocation3] sm:$0xff]
    %v273 = vld [vmem:[#allocation3 + $0x8] sm:$0xff]
    %v274 = vld [vmem:[#allocation3 + $0x10] sm:$0xff]
    %v275 = vld [vmem:[#allocation3 + $0x18] sm:$0xff]
    %v276 = vld [vmem:[#allocation3 + $0x20] sm:$0xff]
    %v277 = vld [vmem:[#allocation3 + $0x28] sm:$0xff]
    %v278 = vld [vmem:[#allocation3 + $0x30] sm:$0xff]
    %v279 = vld [vmem:[#allocation3 + $0x38] sm:$0xff]
    %v280 = vld [vmem:[#allocation3 + $0x40] sm:$0xff]
    %v281 = vld [vmem:[#allocation3 + $0x48] sm:$0xff]
    %v282 = vld [vmem:[#allocation3 + $0x50] sm:$0xff]
    %v283 = vld [vmem:[#allocation3 + $0x58] sm:$0xff]
    %v284 = vld [vmem:[#allocation3 + $0x60] sm:$0xff]
    %v285 = vld [vmem:[#allocation3 + $0x68] sm:$0xff]
    %v286 = vld [vmem:[#allocation3 + $0x70] sm:$0xff]
    %v287 = vld [vmem:[#allocation3 + $0x78] sm:$0xff]
    %v288 = vld [vmem:[#allocation3 + $0x80] sm:$0xff]
    %v289 = vld [vmem:[#allocation3 + $0x88] sm:$0xff]
    %v290 = vld [vmem:[#allocation3 + $0x90] sm:$0xff]
    %v291 = vld [vmem:[#allocation3 + $0x98] sm:$0xff]
    %v292 = vld [vmem:[#allocation3 + $0xa0] sm:$0xff]
    %v293 = vld [vmem:[#allocation3 + $0xa8] sm:$0xff]
    %v294 = vld [vmem:[#allocation3 + $0xb0] sm:$0xff]
    %v295 = vld [vmem:[#allocation3 + $0xb8] sm:$0xff]
    %v296 = vld [vmem:[#allocation3 + $0xc0] sm:$0xff]
    %v297 = vld [vmem:[#allocation3 + $0xc8] sm:$0xff]
    %v298 = vld [vmem:[#allocation3 + $0xd0] sm:$0xff]
    %v299 = vld [vmem:[#allocation3 + $0xd8] sm:$0xff]
    %v300 = vld [vmem:[#allocation3 + $0xe0] sm:$0xff]
    %v301 = vld [vmem:[#allocation3 + $0xe8] sm:$0xff]
    %v302 = vld [vmem:[#allocation3 + $0xf0] sm:$0xff]
    %v303 = vld [vmem:[#allocation3 + $0xf8] sm:$0xff]
    %v304 = vld [vmem:[#allocation3 + $0x100] sm:$0xff]
    %v305 = vld [vmem:[#allocation3 + $0x108] sm:$0xff]
    %v306 = vld [vmem:[#allocation3 + $0x110] sm:$0xff]
    %v307 = vld [vmem:[#allocation3 + $0x118] sm:$0xff]
    %v308 = vld [vmem:[#allocation3 + $0x120] sm:$0xff]
    %v309 = vld [vmem:[#allocation3 + $0x128] sm:$0xff]
    %v310 = vld [vmem:[#allocation3 + $0x130] sm:$0xff]
    %v311 = vld [vmem:[#allocation3 + $0x138] sm:$0xff]
    %v312 = vld [vmem:[#allocation3 + $0x140] sm:$0xff]
    %v313 = vld [vmem:[#allocation3 + $0x148] sm:$0xff]
    %v314 = vld [vmem:[#allocation3 + $0x150] sm:$0xff]
    %v315 = vld [vmem:[#allocation3 + $0x158] sm:$0xff]
    %v316 = vld [vmem:[#allocation3 + $0x160] sm:$0xff]
    %v317 = vld [vmem:[#allocation3 + $0x168] sm:$0xff]
    %v318 = vld [vmem:[#allocation3 + $0x170] sm:$0xff]
    %v319 = vld [vmem:[#allocation3 + $0x178] sm:$0xff]
    %v320 = vld [vmem:[#allocation3 + $0x180] sm:$0xff]
    %v321 = vld [vmem:[#allocation3 + $0x188] sm:$0xff]
    %v322 = vld [vmem:[#allocation3 + $0x190] sm:$0xff]
    %v323 = vld [vmem:[#allocation3 + $0x198] sm:$0xff]
    %v324 = vld [vmem:[#allocation3 + $0x1a0] sm:$0xff]
    %v325 = vld [vmem:[#allocation3 + $0x1a8] sm:$0xff]
    %v326 = vld [vmem:[#allocation3 + $0x1b0] sm:$0xff]
    %v327 = vld [vmem:[#allocation3 + $0x1b8] sm:$0xff]
    %v328 = vld [vmem:[#allocation3 + $0x1c0] sm:$0xff]
    %v329 = vld [vmem:[#allocation3 + $0x1c8] sm:$0xff]
    %v330 = vld [vmem:[#allocation3 + $0x1d0] sm:$0xff]
    %v331 = vld [vmem:[#allocation3 + $0x1d8] sm:$0xff]
    %v332 = vld [vmem:[#allocation3 + $0x1e0] sm:$0xff]
    %v333 = vld [vmem:[#allocation3 + $0x1e8] sm:$0xff]
    %v334 = vld [vmem:[#allocation3 + $0x1f0] sm:$0xff]
    %v335 = vld [vmem:[#allocation3 + $0x1f8] sm:$0xff]
    %336 = vmatprep.subr.mxu0 %v333
    %337 = vmatpush1.msra.mxu0 %v332
    %338 = vmatprep.subr.mxu0 %v329
    %339 = vmatpush1.msra.mxu0 %v328
    %340 = vmatprep.subr.mxu0 %v325
    %341 = vmatpush1.msra.mxu0 %v324
    %342 = vmatprep.subr.mxu0 %v321
    %343 = vmatpush1.msra.mxu0 %v320
    %344 = vmatprep.subr.mxu0 %v317
    %345 = vmatpush1.msra.mxu0 %v316
    %346 = vmatprep.subr.mxu0 %v313
    %347 = vmatpush1.msra.mxu0 %v312
    %348 = vmatprep.subr.mxu0 %v309
    %349 = vmatpush1.msra.mxu0 %v308
    %350 = vmatprep.subr.mxu0 %v305
    %351 = vmatpush1.msra.mxu0 %v304
    %352 = vmatprep.subr.mxu0 %v301
    %353 = vmatpush1.msra.mxu0 %v300
    %354 = vmatprep.subr.mxu0 %v297
    %355 = vmatpush1.msra.mxu0 %v296
    %356 = vmatprep.subr.mxu0 %v293
    %357 = vmatpush1.msra.mxu0 %v292
    %358 = vmatprep.subr.mxu0 %v289
    %359 = vmatpush1.msra.mxu0 %v288
    %360 = vmatprep.subr.mxu0 %v285
    %361 = vmatpush1.msra.mxu0 %v284
    %362 = vmatprep.subr.mxu0 %v281
    %363 = vmatpush1.msra.mxu0 %v280
    %364 = vmatprep.subr.mxu0 %v277
    %365 = vmatpush1.msra.mxu0 %v276
    %366 = vmatprep.subr.mxu0 %v273
    %367 = vmatpush1.msra.mxu0 %v272
    %368 = vmatprep.subr.mxu0 0.0
    %369 = vmatpush2.msra.mxu0 0.0
    %370 = vmatprep.subr.mxu0 0.0
    %371 = vmatpush2.msra.mxu0 0.0
    %372 = vmatprep.subr.mxu0 0.0
    %373 = vmatpush2.msra.mxu0 0.0
    %374 = vmatprep.subr.mxu0 0.0
    %375 = vmatpush2.msra.mxu0 0.0
    %376 = vmatprep.subr.mxu0 0.0
    %377 = vmatpush2.msra.mxu0 0.0
    %378 = vmatprep.subr.mxu0 0.0
    %379 = vmatpush2.msra.mxu0 0.0
    %380 = vmatprep.subr.mxu0 0.0
    %381 = vmatpush2.msra.mxu0 0.0
    %382 = vmatprep.subr.mxu0 0.0
    %383 = vmatpush2.msra.mxu0 0.0
    %384 = vmatprep.subr.mxu0 0.0
    %385 = vmatpush2.msra.mxu0 0.0
    %386 = vmatprep.subr.mxu0 0.0
    %387 = vmatpush2.msra.mxu0 0.0
    %388 = vmatprep.subr.mxu0 0.0
    %389 = vmatpush2.msra.mxu0 0.0
    %390 = vmatprep.subr.mxu0 0.0
    %391 = vmatpush2.msra.mxu0 0.0
    %392 = vmatprep.subr.mxu0 0.0
    %393 = vmatpush2.msra.mxu0 0.0
    %394 = vmatprep.subr.mxu0 0.0
    %395 = vmatpush2.msra.mxu0 0.0
    %396 = vmatprep.subr.mxu0 0.0
    %397 = vmatpush2.msra.mxu0 0.0
    %398 = vmatprep.subr.mxu0 0.0
    %399 = vmatpush2.msra.mxu0 0.0
    %400 = vmatprep.mubr.f32.mxu0 0.0
    %401 = vmatmul.mubr.f32.gmra.mxu0 0.0
    %v402 = vpop.f32.mrf.mxu0
    %v403 = vadd.f32 0.0, %v402
    %v404 = vpop.f32.mrf.mxu0
    %v405 = vadd.f32 0.0, %v404
    %406 = vdwg.mxu0
    %407 = vmatprep.subr.mxu0 %v335
    %408 = vmatpush1.msra.mxu0 %v334
    %409 = vmatprep.subr.mxu0 %v331
    %410 = vmatpush1.msra.mxu0 %v330
    %411 = vmatprep.subr.mxu0 %v327
    %412 = vmatpush1.msra.mxu0 %v326
    %413 = vmatprep.subr.mxu0 %v323
    %414 = vmatpush1.msra.mxu0 %v322
    %415 = vmatprep.subr.mxu0 %v319
    %416 = vmatpush1.msra.mxu0 %v318
    %417 = vmatprep.subr.mxu0 %v315
    %418 = vmatpush1.msra.mxu0 %v314
    %419 = vmatprep.subr.mxu0 %v311
    %420 = vmatpush1.msra.mxu0 %v310
    %421 = vmatprep.subr.mxu0 %v307
    %422 = vmatpush1.msra.mxu0 %v306
    %423 = vmatprep.subr.mxu0 %v303
    %424 = vmatpush1.msra.mxu0 %v302
    %425 = vmatprep.subr.mxu0 %v299
    %426 = vmatpush1.msra.mxu0 %v298
    %427 = vmatprep.subr.mxu0 %v295
    %428 = vmatpush1.msra.mxu0 %v294
    %429 = vmatprep.subr.mxu0 %v291
    %430 = vmatpush1.msra.mxu0 %v290
    %431 = vmatprep.subr.mxu0 %v287
    %432 = vmatpush1.msra.mxu0 %v286
    %433 = vmatprep.subr.mxu0 %v283
    %434 = vmatpush1.msra.mxu0 %v282
    %435 = vmatprep.subr.mxu0 %v279
    %436 = vmatpush1.msra.mxu0 %v278
    %437 = vmatprep.subr.mxu0 %v275
    %438 = vmatpush1.msra.mxu0 %v274
    %439 = vmatprep.subr.mxu0 0.0
    %440 = vmatpush2.msra.mxu0 0.0
    %441 = vmatprep.subr.mxu0 0.0
    %442 = vmatpush2.msra.mxu0 0.0
    %443 = vmatprep.subr.mxu0 0.0
    %444 = vmatpush2.msra.mxu0 0.0
    %445 = vmatprep.subr.mxu0 0.0
    %446 = vmatpush2.msra.mxu0 0.0
    %447 = vmatprep.subr.mxu0 0.0
    %448 = vmatpush2.msra.mxu0 0.0
    %449 = vmatprep.subr.mxu0 0.0
    %450 = vmatpush2.msra.mxu0 0.0
    %451 = vmatprep.subr.mxu0 0.0
    %452 = vmatpush2.msra.mxu0 0.0
    %453 = vmatprep.subr.mxu0 0.0
    %454 = vmatpush2.msra.mxu0 0.0
    %455 = vmatprep.subr.mxu0 0.0
    %456 = vmatpush2.msra.mxu0 0.0
    %457 = vmatprep.subr.mxu0 0.0
    %458 = vmatpush2.msra.mxu0 0.0
    %459 = vmatprep.subr.mxu0 0.0
    %460 = vmatpush2.msra.mxu0 0.0
    %461 = vmatprep.subr.mxu0 0.0
    %462 = vmatpush2.msra.mxu0 0.0
    %463 = vmatprep.subr.mxu0 0.0
    %464 = vmatpush2.msra.mxu0 0.0
    %465 = vmatprep.subr.mxu0 0.0
    %466 = vmatpush2.msra.mxu0 0.0
    %467 = vmatprep.subr.mxu0 0.0
    %468 = vmatpush2.msra.mxu0 0.0
    %469 = vmatprep.subr.mxu0 0.0
    %470 = vmatpush2.msra.mxu0 0.0
    %471 = vmatprep.mubr.f32.mxu0 0.0
    %472 = vmatmul.mubr.f32.gmra.mxu0 0.0
    %v473 = vpop.f32.mrf.mxu0
    %v474 = vadd.f32 0.0, %v473
    %v475 = vpop.f32.mrf.mxu0
    %v476 = vadd.f32 0.0, %v475
    %477 = vdwg.mxu0
    %v478 = vadd.f32 %v268, %v403
    %v479 = vadd.f32 %v269, %v405
    %v480 = vadd.f32 %v270, %v474
    %v481 = vadd.f32 %v271, %v476
    %v482 = vxor.u32 %v478, 2147483648
    %v483 = vxor.u32 %v479, 2147483648
    %v484 = vxor.u32 %v480, 2147483648
    %v485 = vmul.f32 %v482, 1.442695
    %v486 = vpow.pop %v485
    %v487 = vmul.f32 %v483, 1.442695
    %v488 = vpow.pop %v487
    %v489 = vmul.f32 %v484, 1.442695
    %v490 = vpow.pop %v489
    %v491 = vadd.f32 %v486, 1.0
    %v492 = vadd.f32 %v488, 1.0
    %v493 = vadd.f32 %v490, 1.0
    %v494 = vrcp.pop %v491
    %v495 = vmul.f32 1.0, %v494
    %v496 = vrcp.pop %v492
    %v497 = vmul.f32 1.0, %v496
    %v498 = vrcp.pop %v493
    %v499 = vmul.f32 1.0, %v498
    %v500 = vtanh.pop %v481
    %v501 = vmul.f32 %v497, 0.0
    %v502 = vmul.f32 %v495, %v500
    %v503 = vadd.f32 %v501, %v502
    %v504 = vtanh.pop %v503
    %v505 = vmul.f32 %v499, %v504
    %v506 = vld [vmem:[#allocation2] sm:$0xf0]
    %v507 = vld [vmem:[#allocation2 + $0x8] sm:$0xf0]
    %v508 = vld [vmem:[#allocation2 + $0x10] sm:$0xf0]
    %v509 = vld [vmem:[#allocation2 + $0x18] sm:$0xf0]
    %510 = vmatprep.subr.mxu0 %v333
    %511 = vmatpush1.msra.mxu0 %v332
    %512 = vmatprep.subr.mxu0 %v329
    %513 = vmatpush1.msra.mxu0 %v328
    %514 = vmatprep.subr.mxu0 %v325
    %515 = vmatpush1.msra.mxu0 %v324
    %516 = vmatprep.subr.mxu0 %v321
    %517 = vmatpush1.msra.mxu0 %v320
    %518 = vmatprep.subr.mxu0 %v317
    %519 = vmatpush1.msra.mxu0 %v316
    %520 = vmatprep.subr.mxu0 %v313
    %521 = vmatpush1.msra.mxu0 %v312
    %522 = vmatprep.subr.mxu0 %v309
    %523 = vmatpush1.msra.mxu0 %v308
    %524 = vmatprep.subr.mxu0 %v305
    %525 = vmatpush1.msra.mxu0 %v304
    %526 = vmatprep.subr.mxu0 %v301
    %527 = vmatpush1.msra.mxu0 %v300
    %528 = vmatprep.subr.mxu0 %v297
    %529 = vmatpush1.msra.mxu0 %v296
    %530 = vmatprep.subr.mxu0 %v293
    %531 = vmatpush1.msra.mxu0 %v292
    %532 = vmatprep.subr.mxu0 %v289
    %533 = vmatpush1.msra.mxu0 %v288
    %534 = vmatprep.subr.mxu0 %v285
    %535 = vmatpush1.msra.mxu0 %v284
    %536 = vmatprep.subr.mxu0 %v281
    %537 = vmatpush1.msra.mxu0 %v280
    %538 = vmatprep.subr.mxu0 %v277
    %539 = vmatpush1.msra.mxu0 %v276
    %540 = vmatprep.subr.mxu0 %v273
    %541 = vmatpush1.msra.mxu0 %v272
    %542 = vmatprep.subr.mxu0 0.0
    %543 = vmatpush2.msra.mxu0 0.0
    %544 = vmatprep.subr.mxu0 0.0
    %545 = vmatpush2.msra.mxu0 0.0
    %546 = vmatprep.subr.mxu0 0.0
    %547 = vmatpush2.msra.mxu0 0.0
    %548 = vmatprep.subr.mxu0 0.0
    %549 = vmatpush2.msra.mxu0 0.0
    %550 = vmatprep.subr.mxu0 0.0
    %551 = vmatpush2.msra.mxu0 0.0
    %552 = vmatprep.subr.mxu0 0.0
    %553 = vmatpush2.msra.mxu0 0.0
    %554 = vmatprep.subr.mxu0 0.0
    %555 = vmatpush2.msra.mxu0 0.0
    %556 = vmatprep.subr.mxu0 0.0
    %557 = vmatpush2.msra.mxu0 0.0
    %558 = vmatprep.subr.mxu0 0.0
    %559 = vmatpush2.msra.mxu0 0.0
    %560 = vmatprep.subr.mxu0 0.0
    %561 = vmatpush2.msra.mxu0 0.0
    %562 = vmatprep.subr.mxu0 0.0
    %563 = vmatpush2.msra.mxu0 0.0
    %564 = vmatprep.subr.mxu0 0.0
    %565 = vmatpush2.msra.mxu0 0.0
    %566 = vmatprep.subr.mxu0 0.0
    %567 = vmatpush2.msra.mxu0 0.0
    %568 = vmatprep.subr.mxu0 0.0
    %569 = vmatpush2.msra.mxu0 0.0
    %570 = vmatprep.subr.mxu0 0.0
    %571 = vmatpush2.msra.mxu0 0.0
    %572 = vmatprep.subr.mxu0 0.0
    %573 = vmatpush2.msra.mxu0 0.0
    %574 = vmatprep.mubr.f32.mxu0 0.0
    %575 = vmatmul.mubr.f32.gmra.mxu0 %v505
    %v576 = vpop.f32.mrf.mxu0
    %v577 = vadd.f32 0.0, %v576
    %v578 = vpop.f32.mrf.mxu0
    %v579 = vadd.f32 0.0, %v578
    %580 = vdwg.mxu0
    %581 = vmatprep.subr.mxu0 %v335
    %582 = vmatpush1.msra.mxu0 %v334
    %583 = vmatprep.subr.mxu0 %v331
    %584 = vmatpush1.msra.mxu0 %v330
    %585 = vmatprep.subr.mxu0 %v327
    %586 = vmatpush1.msra.mxu0 %v326
    %587 = vmatprep.subr.mxu0 %v323
    %588 = vmatpush1.msra.mxu0 %v322
    %589 = vmatprep.subr.mxu0 %v319
    %590 = vmatpush1.msra.mxu0 %v318
    %591 = vmatprep.subr.mxu0 %v315
    %592 = vmatpush1.msra.mxu0 %v314
    %593 = vmatprep.subr.mxu0 %v311
    %594 = vmatpush1.msra.mxu0 %v310
    %595 = vmatprep.subr.mxu0 %v307
    %596 = vmatpush1.msra.mxu0 %v306
    %597 = vmatprep.subr.mxu0 %v303
    %598 = vmatpush1.msra.mxu0 %v302
    %599 = vmatprep.subr.mxu0 %v299
    %600 = vmatpush1.msra.mxu0 %v298
    %601 = vmatprep.subr.mxu0 %v295
    %602 = vmatpush1.msra.mxu0 %v294
    %603 = vmatprep.subr.mxu0 %v291
    %604 = vmatpush1.msra.mxu0 %v290
    %605 = vmatprep.subr.mxu0 %v287
    %606 = vmatpush1.msra.mxu0 %v286
    %607 = vmatprep.subr.mxu0 %v283
    %608 = vmatpush1.msra.mxu0 %v282
    %609 = vmatprep.subr.mxu0 %v279
    %610 = vmatpush1.msra.mxu0 %v278
    %611 = vmatprep.subr.mxu0 %v275
    %612 = vmatpush1.msra.mxu0 %v274
    %613 = vmatprep.subr.mxu0 0.0
    %614 = vmatpush2.msra.mxu0 0.0
    %615 = vmatprep.subr.mxu0 0.0
    %616 = vmatpush2.msra.mxu0 0.0
    %617 = vmatprep.subr.mxu0 0.0
    %618 = vmatpush2.msra.mxu0 0.0
    %619 = vmatprep.subr.mxu0 0.0
    %620 = vmatpush2.msra.mxu0 0.0
    %621 = vmatprep.subr.mxu0 0.0
    %622 = vmatpush2.msra.mxu0 0.0
    %623 = vmatprep.subr.mxu0 0.0
    %624 = vmatpush2.msra.mxu0 0.0
    %625 = vmatprep.subr.mxu0 0.0
    %626 = vmatpush2.msra.mxu0 0.0
    %627 = vmatprep.subr.mxu0 0.0
    %628 = vmatpush2.msra.mxu0 0.0
    %629 = vmatprep.subr.mxu0 0.0
    %630 = vmatpush2.msra.mxu0 0.0
    %631 = vmatprep.subr.mxu0 0.0
    %632 = vmatpush2.msra.mxu0 0.0
    %633 = vmatprep.subr.mxu0 0.0
    %634 = vmatpush2.msra.mxu0 0.0
    %635 = vmatprep.subr.mxu0 0.0
    %636 = vmatpush2.msra.mxu0 0.0
    %637 = vmatprep.subr.mxu0 0.0
    %638 = vmatpush2.msra.mxu0 0.0
    %639 = vmatprep.subr.mxu0 0.0
    %640 = vmatpush2.msra.mxu0 0.0
    %641 = vmatprep.subr.mxu0 0.0
    %642 = vmatpush2.msra.mxu0 0.0
    %643 = vmatprep.subr.mxu0 0.0
    %644 = vmatpush2.msra.mxu0 0.0
    %645 = vmatprep.mubr.f32.mxu0 0.0
    %646 = vmatmul.mubr.f32.gmra.mxu0 %v505
    %v647 = vpop.f32.mrf.mxu0
    %v648 = vadd.f32 0.0, %v647
    %v649 = vpop.f32.mrf.mxu0
    %v650 = vadd.f32 0.0, %v649
    %651 = vdwg.mxu0
    %v656 = vrot.slane %v577, 4
    %v657 = vrot.slane %v579, 4
    %v658 = vrot.slane %v648, 4
    %v659 = vrot.slane %v650, 4
    %v664 = vadd.f32 %v506, %v656
    %v665 = vadd.f32 %v507, %v657
    %v666 = vadd.f32 %v508, %v658
    %v667 = vadd.f32 %v509, %v659
    %v668 = vxor.u32 %v664, 2147483648
    %v669 = vxor.u32 %v665, 2147483648
    %v670 = vxor.u32 %v666, 2147483648
    %v671 = vmul.f32 %v668, 1.442695
    %v672 = vpow.pop %v671
    %v673 = vmul.f32 %v669, 1.442695
    %v674 = vpow.pop %v673
    %v675 = vmul.f32 %v670, 1.442695
    %v676 = vpow.pop %v675
    %v677 = vadd.f32 %v672, 1.0
    %v678 = vadd.f32 %v674, 1.0
    %v679 = vadd.f32 %v676, 1.0
    %v680 = vrcp.pop %v677
    %v681 = vmul.f32 1.0, %v680
    %v682 = vrcp.pop %v678
    %v683 = vmul.f32 1.0, %v682
    %v684 = vrcp.pop %v679
    %v685 = vmul.f32 1.0, %v684
    %v686 = vtanh.pop %v667
    %v688 = vrot.slane %v503, 4
    %v690 = vmul.f32 %v683, %v688
    %v691 = vmul.f32 %v681, %v686
    %v692 = vadd.f32 %v690, %v691
    %v693 = vtanh.pop %v692
    %v694 = vmul.f32 %v685, %v693
    %v695 = vld [vmem:[#allocation2 + $0x20] sm:$0xf]
    %v696 = vld [vmem:[#allocation2 + $0x28] sm:$0xf]
    %v697 = vld [vmem:[#allocation2 + $0x30] sm:$0xf]
    %v698 = vld [vmem:[#allocation2 + $0x38] sm:$0xf]
    %v700 = vrot.slane %v694, 4
    %702 = vmatprep.subr.mxu0 %v333
    %703 = vmatpush1.msra.mxu0 %v332
    %704 = vmatprep.subr.mxu0 %v329
    %705 = vmatpush1.msra.mxu0 %v328
    %706 = vmatprep.subr.mxu0 %v325
    %707 = vmatpush1.msra.mxu0 %v324
    %708 = vmatprep.subr.mxu0 %v321
    %709 = vmatpush1.msra.mxu0 %v320
    %710 = vmatprep.subr.mxu0 %v317
    %711 = vmatpush1.msra.mxu0 %v316
    %712 = vmatprep.subr.mxu0 %v313
    %713 = vmatpush1.msra.mxu0 %v312
    %714 = vmatprep.subr.mxu0 %v309
    %715 = vmatpush1.msra.mxu0 %v308
    %716 = vmatprep.subr.mxu0 %v305
    %717 = vmatpush1.msra.mxu0 %v304
    %718 = vmatprep.subr.mxu0 %v301
    %719 = vmatpush1.msra.mxu0 %v300
    %720 = vmatprep.subr.mxu0 %v297
    %721 = vmatpush1.msra.mxu0 %v296
    %722 = vmatprep.subr.mxu0 %v293
    %723 = vmatpush1.msra.mxu0 %v292
    %724 = vmatprep.subr.mxu0 %v289
    %725 = vmatpush1.msra.mxu0 %v288
    %726 = vmatprep.subr.mxu0 %v285
    %727 = vmatpush1.msra.mxu0 %v284
    %728 = vmatprep.subr.mxu0 %v281
    %729 = vmatpush1.msra.mxu0 %v280
    %730 = vmatprep.subr.mxu0 %v277
    %731 = vmatpush1.msra.mxu0 %v276
    %732 = vmatprep.subr.mxu0 %v273
    %733 = vmatpush1.msra.mxu0 %v272
    %734 = vmatprep.subr.mxu0 0.0
    %735 = vmatpush2.msra.mxu0 0.0
    %736 = vmatprep.subr.mxu0 0.0
    %737 = vmatpush2.msra.mxu0 0.0
    %738 = vmatprep.subr.mxu0 0.0
    %739 = vmatpush2.msra.mxu0 0.0
    %740 = vmatprep.subr.mxu0 0.0
    %741 = vmatpush2.msra.mxu0 0.0
    %742 = vmatprep.subr.mxu0 0.0
    %743 = vmatpush2.msra.mxu0 0.0
    %744 = vmatprep.subr.mxu0 0.0
    %745 = vmatpush2.msra.mxu0 0.0
    %746 = vmatprep.subr.mxu0 0.0
    %747 = vmatpush2.msra.mxu0 0.0
    %748 = vmatprep.subr.mxu0 0.0
    %749 = vmatpush2.msra.mxu0 0.0
    %750 = vmatprep.subr.mxu0 0.0
    %751 = vmatpush2.msra.mxu0 0.0
    %752 = vmatprep.subr.mxu0 0.0
    %753 = vmatpush2.msra.mxu0 0.0
    %754 = vmatprep.subr.mxu0 0.0
    %755 = vmatpush2.msra.mxu0 0.0
    %756 = vmatprep.subr.mxu0 0.0
    %757 = vmatpush2.msra.mxu0 0.0
    %758 = vmatprep.subr.mxu0 0.0
    %759 = vmatpush2.msra.mxu0 0.0
    %760 = vmatprep.subr.mxu0 0.0
    %761 = vmatpush2.msra.mxu0 0.0
    %762 = vmatprep.subr.mxu0 0.0
    %763 = vmatpush2.msra.mxu0 0.0
    %764 = vmatprep.subr.mxu0 0.0
    %765 = vmatpush2.msra.mxu0 0.0
    %766 = vmatprep.mubr.f32.mxu0 0.0
    %767 = vmatmul.mubr.f32.gmra.mxu0 %v700
    %v768 = vpop.f32.mrf.mxu0
    %v769 = vadd.f32 0.0, %v768
    %v770 = vpop.f32.mrf.mxu0
    %v771 = vadd.f32 0.0, %v770
    %772 = vdwg.mxu0
    %773 = vmatprep.subr.mxu0 %v335
    %774 = vmatpush1.msra.mxu0 %v334
    %775 = vmatprep.subr.mxu0 %v331
    %776 = vmatpush1.msra.mxu0 %v330
    %777 = vmatprep.subr.mxu0 %v327
    %778 = vmatpush1.msra.mxu0 %v326
    %779 = vmatprep.subr.mxu0 %v323
    %780 = vmatpush1.msra.mxu0 %v322
    %781 = vmatprep.subr.mxu0 %v319
    %782 = vmatpush1.msra.mxu0 %v318
    %783 = vmatprep.subr.mxu0 %v315
    %784 = vmatpush1.msra.mxu0 %v314
    %785 = vmatprep.subr.mxu0 %v311
    %786 = vmatpush1.msra.mxu0 %v310
    %787 = vmatprep.subr.mxu0 %v307
    %788 = vmatpush1.msra.mxu0 %v306
    %789 = vmatprep.subr.mxu0 %v303
    %790 = vmatpush1.msra.mxu0 %v302
    %791 = vmatprep.subr.mxu0 %v299
    %792 = vmatpush1.msra.mxu0 %v298
    %793 = vmatprep.subr.mxu0 %v295
    %794 = vmatpush1.msra.mxu0 %v294
    %795 = vmatprep.subr.mxu0 %v291
    %796 = vmatpush1.msra.mxu0 %v290
    %797 = vmatprep.subr.mxu0 %v287
    %798 = vmatpush1.msra.mxu0 %v286
    %799 = vmatprep.subr.mxu0 %v283
    %800 = vmatpush1.msra.mxu0 %v282
    %801 = vmatprep.subr.mxu0 %v279
    %802 = vmatpush1.msra.mxu0 %v278
    %803 = vmatprep.subr.mxu0 %v275
    %804 = vmatpush1.msra.mxu0 %v274
    %805 = vmatprep.subr.mxu0 0.0
    %806 = vmatpush2.msra.mxu0 0.0
    %807 = vmatprep.subr.mxu0 0.0
    %808 = vmatpush2.msra.mxu0 0.0
    %809 = vmatprep.subr.mxu0 0.0
    %810 = vmatpush2.msra.mxu0 0.0
    %811 = vmatprep.subr.mxu0 0.0
    %812 = vmatpush2.msra.mxu0 0.0
    %813 = vmatprep.subr.mxu0 0.0
    %814 = vmatpush2.msra.mxu0 0.0
    %815 = vmatprep.subr.mxu0 0.0
    %816 = vmatpush2.msra.mxu0 0.0
    %817 = vmatprep.subr.mxu0 0.0
    %818 = vmatpush2.msra.mxu0 0.0
    %819 = vmatprep.subr.mxu0 0.0
    %820 = vmatpush2.msra.mxu0 0.0
    %821 = vmatprep.subr.mxu0 0.0
    %822 = vmatpush2.msra.mxu0 0.0
    %823 = vmatprep.subr.mxu0 0.0
    %824 = vmatpush2.msra.mxu0 0.0
    %825 = vmatprep.subr.mxu0 0.0
    %826 = vmatpush2.msra.mxu0 0.0
    %827 = vmatprep.subr.mxu0 0.0
    %828 = vmatpush2.msra.mxu0 0.0
    %829 = vmatprep.subr.mxu0 0.0
    %830 = vmatpush2.msra.mxu0 0.0
    %831 = vmatprep.subr.mxu0 0.0
    %832 = vmatpush2.msra.mxu0 0.0
    %833 = vmatprep.subr.mxu0 0.0
    %834 = vmatpush2.msra.mxu0 0.0
    %835 = vmatprep.subr.mxu0 0.0
    %836 = vmatpush2.msra.mxu0 0.0
    %837 = vmatprep.mubr.f32.mxu0 0.0
    %838 = vmatmul.mubr.f32.gmra.mxu0 %v700
    %v839 = vpop.f32.mrf.mxu0
    %v840 = vadd.f32 0.0, %v839
    %v841 = vpop.f32.mrf.mxu0
    %v842 = vadd.f32 0.0, %v841
    %843 = vdwg.mxu0
    %v844 = vadd.f32 %v695, %v769
    %v845 = vadd.f32 %v696, %v771
    %v846 = vadd.f32 %v697, %v840
    %v847 = vadd.f32 %v698, %v842
    %v848 = vxor.u32 %v844, 2147483648
    %v849 = vxor.u32 %v845, 2147483648
    %v850 = vxor.u32 %v846, 2147483648
    %v851 = vmul.f32 %v848, 1.442695
    %v852 = vpow.pop %v851
    %v853 = vmul.f32 %v849, 1.442695
    %v854 = vpow.pop %v853
    %v855 = vmul.f32 %v850, 1.442695
    %v856 = vpow.pop %v855
    %v857 = vadd.f32 %v852, 1.0
    %v858 = vadd.f32 %v854, 1.0
    %v859 = vadd.f32 %v856, 1.0
    %v860 = vrcp.pop %v857
    %v861 = vmul.f32 1.0, %v860
    %v862 = vrcp.pop %v858
    %v863 = vmul.f32 1.0, %v862
    %v864 = vrcp.pop %v859
    %v865 = vmul.f32 1.0, %v864
    %v866 = vtanh.pop %v847
    %v868 = vrot.slane %v692, 4
    %v870 = vmul.f32 %v863, %v868
    %v871 = vmul.f32 %v861, %v866
    %v872 = vadd.f32 %v870, %v871
    %v873 = vtanh.pop %v872
    %v874 = vmul.f32 %v865, %v873
    %v875 = vld [vmem:[#allocation2 + $0x20] sm:$0xf0]
    %v876 = vld [vmem:[#allocation2 + $0x28] sm:$0xf0]
    %v877 = vld [vmem:[#allocation2 + $0x30] sm:$0xf0]
    %v878 = vld [vmem:[#allocation2 + $0x38] sm:$0xf0]
    %879 = vmatprep.subr.mxu0 %v333
    %880 = vmatpush1.msra.mxu0 %v332
    %881 = vmatprep.subr.mxu0 %v329
    %882 = vmatpush1.msra.mxu0 %v328
    %883 = vmatprep.subr.mxu0 %v325
    %884 = vmatpush1.msra.mxu0 %v324
    %885 = vmatprep.subr.mxu0 %v321
    %886 = vmatpush1.msra.mxu0 %v320
    %887 = vmatprep.subr.mxu0 %v317
    %888 = vmatpush1.msra.mxu0 %v316
    %889 = vmatprep.subr.mxu0 %v313
    %890 = vmatpush1.msra.mxu0 %v312
    %891 = vmatprep.subr.mxu0 %v309
    %892 = vmatpush1.msra.mxu0 %v308
    %893 = vmatprep.subr.mxu0 %v305
    %894 = vmatpush1.msra.mxu0 %v304
    %895 = vmatprep.subr.mxu0 %v301
    %896 = vmatpush1.msra.mxu0 %v300
    %897 = vmatprep.subr.mxu0 %v297
    %898 = vmatpush1.msra.mxu0 %v296
    %899 = vmatprep.subr.mxu0 %v293
    %900 = vmatpush1.msra.mxu0 %v292
    %901 = vmatprep.subr.mxu0 %v289
    %902 = vmatpush1.msra.mxu0 %v288
    %903 = vmatprep.subr.mxu0 %v285
    %904 = vmatpush1.msra.mxu0 %v284
    %905 = vmatprep.subr.mxu0 %v281
    %906 = vmatpush1.msra.mxu0 %v280
    %907 = vmatprep.subr.mxu0 %v277
    %908 = vmatpush1.msra.mxu0 %v276
    %909 = vmatprep.subr.mxu0 %v273
    %910 = vmatpush1.msra.mxu0 %v272
    %911 = vmatprep.subr.mxu0 0.0
    %912 = vmatpush2.msra.mxu0 0.0
    %913 = vmatprep.subr.mxu0 0.0
    %914 = vmatpush2.msra.mxu0 0.0
    %915 = vmatprep.subr.mxu0 0.0
    %916 = vmatpush2.msra.mxu0 0.0
    %917 = vmatprep.subr.mxu0 0.0
    %918 = vmatpush2.msra.mxu0 0.0
    %919 = vmatprep.subr.mxu0 0.0
    %920 = vmatpush2.msra.mxu0 0.0
    %921 = vmatprep.subr.mxu0 0.0
    %922 = vmatpush2.msra.mxu0 0.0
    %923 = vmatprep.subr.mxu0 0.0
    %924 = vmatpush2.msra.mxu0 0.0
    %925 = vmatprep.subr.mxu0 0.0
    %926 = vmatpush2.msra.mxu0 0.0
    %927 = vmatprep.subr.mxu0 0.0
    %928 = vmatpush2.msra.mxu0 0.0
    %929 = vmatprep.subr.mxu0 0.0
    %930 = vmatpush2.msra.mxu0 0.0
    %931 = vmatprep.subr.mxu0 0.0
    %932 = vmatpush2.msra.mxu0 0.0
    %933 = vmatprep.subr.mxu0 0.0
    %934 = vmatpush2.msra.mxu0 0.0
    %935 = vmatprep.subr.mxu0 0.0
    %936 = vmatpush2.msra.mxu0 0.0
    %937 = vmatprep.subr.mxu0 0.0
    %938 = vmatpush2.msra.mxu0 0.0
    %939 = vmatprep.subr.mxu0 0.0
    %940 = vmatpush2.msra.mxu0 0.0
    %941 = vmatprep.subr.mxu0 0.0
    %942 = vmatpush2.msra.mxu0 0.0
    %943 = vmatprep.mubr.f32.mxu0 0.0
    %944 = vmatmul.mubr.f32.gmra.mxu0 %v874
    %v945 = vpop.f32.mrf.mxu0
    %v946 = vadd.f32 0.0, %v945
    %v947 = vpop.f32.mrf.mxu0
    %v948 = vadd.f32 0.0, %v947
    %949 = vdwg.mxu0
    %950 = vmatprep.subr.mxu0 %v335
    %951 = vmatpush1.msra.mxu0 %v334
    %952 = vmatprep.subr.mxu0 %v331
    %953 = vmatpush1.msra.mxu0 %v330
    %954 = vmatprep.subr.mxu0 %v327
    %955 = vmatpush1.msra.mxu0 %v326
    %956 = vmatprep.subr.mxu0 %v323
    %957 = vmatpush1.msra.mxu0 %v322
    %958 = vmatprep.subr.mxu0 %v319
    %959 = vmatpush1.msra.mxu0 %v318
    %960 = vmatprep.subr.mxu0 %v315
    %961 = vmatpush1.msra.mxu0 %v314
    %962 = vmatprep.subr.mxu0 %v311
    %963 = vmatpush1.msra.mxu0 %v310
    %964 = vmatprep.subr.mxu0 %v307
    %965 = vmatpush1.msra.mxu0 %v306
    %966 = vmatprep.subr.mxu0 %v303
    %967 = vmatpush1.msra.mxu0 %v302
    %968 = vmatprep.subr.mxu0 %v299
    %969 = vmatpush1.msra.mxu0 %v298
    %970 = vmatprep.subr.mxu0 %v295
    %971 = vmatpush1.msra.mxu0 %v294
    %972 = vmatprep.subr.mxu0 %v291
    %973 = vmatpush1.msra.mxu0 %v290
    %974 = vmatprep.subr.mxu0 %v287
    %975 = vmatpush1.msra.mxu0 %v286
    %976 = vmatprep.subr.mxu0 %v283
    %977 = vmatpush1.msra.mxu0 %v282
    %978 = vmatprep.subr.mxu0 %v279
    %979 = vmatpush1.msra.mxu0 %v278
    %980 = vmatprep.subr.mxu0 %v275
    %981 = vmatpush1.msra.mxu0 %v274
    %982 = vmatprep.subr.mxu0 0.0
    %983 = vmatpush2.msra.mxu0 0.0
    %984 = vmatprep.subr.mxu0 0.0
    %985 = vmatpush2.msra.mxu0 0.0
    %986 = vmatprep.subr.mxu0 0.0
    %987 = vmatpush2.msra.mxu0 0.0
    %988 = vmatprep.subr.mxu0 0.0
    %989 = vmatpush2.msra.mxu0 0.0
    %990 = vmatprep.subr.mxu0 0.0
    %991 = vmatpush2.msra.mxu0 0.0
    %992 = vmatprep.subr.mxu0 0.0
    %993 = vmatpush2.msra.mxu0 0.0
    %994 = vmatprep.subr.mxu0 0.0
    %995 = vmatpush2.msra.mxu0 0.0
    %996 = vmatprep.subr.mxu0 0.0
    %997 = vmatpush2.msra.mxu0 0.0
    %998 = vmatprep.subr.mxu0 0.0
    %999 = vmatpush2.msra.mxu0 0.0
    %1000 = vmatprep.subr.mxu0 0.0
    %1001 = vmatpush2.msra.mxu0 0.0
    %1002 = vmatprep.subr.mxu0 0.0
    %1003 = vmatpush2.msra.mxu0 0.0
    %1004 = vmatprep.subr.mxu0 0.0
    %1005 = vmatpush2.msra.mxu0 0.0
    %1006 = vmatprep.subr.mxu0 0.0
    %1007 = vmatpush2.msra.mxu0 0.0
    %1008 = vmatprep.subr.mxu0 0.0
    %1009 = vmatpush2.msra.mxu0 0.0
    %1010 = vmatprep.subr.mxu0 0.0
    %1011 = vmatpush2.msra.mxu0 0.0
    %1012 = vmatprep.subr.mxu0 0.0
    %1013 = vmatpush2.msra.mxu0 0.0
    %1014 = vmatprep.mubr.f32.mxu0 0.0
    %1015 = vmatmul.mubr.f32.gmra.mxu0 %v874
    %v1016 = vpop.f32.mrf.mxu0
    %v1017 = vadd.f32 0.0, %v1016
    %v1018 = vpop.f32.mrf.mxu0
    %v1019 = vadd.f32 0.0, %v1018
    %1020 = vdwg.mxu0
    %v1025 = vrot.slane %v946, 4
    %v1026 = vrot.slane %v948, 4
    %v1027 = vrot.slane %v1017, 4
    %v1028 = vrot.slane %v1019, 4
    %v1033 = vadd.f32 %v875, %v1025
    %v1034 = vadd.f32 %v876, %v1026
    %v1035 = vadd.f32 %v877, %v1027
    %v1036 = vadd.f32 %v878, %v1028
    %v1037 = vxor.u32 %v1033, 2147483648
    %v1038 = vxor.u32 %v1034, 2147483648
    %v1039 = vxor.u32 %v1035, 2147483648
    %v1040 = vmul.f32 %v1037, 1.442695
    %v1041 = vpow.pop %v1040
    %v1042 = vmul.f32 %v1038, 1.442695
    %v1043 = vpow.pop %v1042
    %v1044 = vmul.f32 %v1039, 1.442695
    %v1045 = vpow.pop %v1044
    %v1046 = vadd.f32 %v1041, 1.0
    %v1047 = vadd.f32 %v1043, 1.0
    %v1048 = vadd.f32 %v1045, 1.0
    %v1049 = vrcp.pop %v1046
    %v1050 = vmul.f32 1.0, %v1049
    %v1051 = vrcp.pop %v1047
    %v1052 = vmul.f32 1.0, %v1051
    %v1053 = vrcp.pop %v1048
    %v1054 = vmul.f32 1.0, %v1053
    %v1055 = vtanh.pop %v1036
    %v1057 = vrot.slane %v872, 4
    %v1059 = vmul.f32 %v1052, %v1057
    %v1060 = vmul.f32 %v1050, %v1055
    %v1061 = vadd.f32 %v1059, %v1060
    %v1062 = vtanh.pop %v1061
    %v1063 = vmul.f32 %v1054, %v1062
    %v1064 = vld [vmem:[#allocation2 + $0x40] sm:$0xf]
    %v1065 = vld [vmem:[#allocation2 + $0x48] sm:$0xf]
    %v1066 = vld [vmem:[#allocation2 + $0x50] sm:$0xf]
    %v1067 = vld [vmem:[#allocation2 + $0x58] sm:$0xf]
    %v1069 = vrot.slane %v1063, 4
    %1071 = vmatprep.subr.mxu0 %v333
    %1072 = vmatpush1.msra.mxu0 %v332
    %1073 = vmatprep.subr.mxu0 %v329
    %1074 = vmatpush1.msra.mxu0 %v328
    %1075 = vmatprep.subr.mxu0 %v325
    %1076 = vmatpush1.msra.mxu0 %v324
    %1077 = vmatprep.subr.mxu0 %v321
    %1078 = vmatpush1.msra.mxu0 %v320
    %1079 = vmatprep.subr.mxu0 %v317
    %1080 = vmatpush1.msra.mxu0 %v316
    %1081 = vmatprep.subr.mxu0 %v313
    %1082 = vmatpush1.msra.mxu0 %v312
    %1083 = vmatprep.subr.mxu0 %v309
    %1084 = vmatpush1.msra.mxu0 %v308
    %1085 = vmatprep.subr.mxu0 %v305
    %1086 = vmatpush1.msra.mxu0 %v304
    %1087 = vmatprep.subr.mxu0 %v301
    %1088 = vmatpush1.msra.mxu0 %v300
    %1089 = vmatprep.subr.mxu0 %v297
    %1090 = vmatpush1.msra.mxu0 %v296
    %1091 = vmatprep.subr.mxu0 %v293
    %1092 = vmatpush1.msra.mxu0 %v292
    %1093 = vmatprep.subr.mxu0 %v289
    %1094 = vmatpush1.msra.mxu0 %v288
    %1095 = vmatprep.subr.mxu0 %v285
    %1096 = vmatpush1.msra.mxu0 %v284
    %1097 = vmatprep.subr.mxu0 %v281
    %1098 = vmatpush1.msra.mxu0 %v280
    %1099 = vmatprep.subr.mxu0 %v277
    %1100 = vmatpush1.msra.mxu0 %v276
    %1101 = vmatprep.subr.mxu0 %v273
    %1102 = vmatpush1.msra.mxu0 %v272
    %1103 = vmatprep.subr.mxu0 0.0
    %1104 = vmatpush2.msra.mxu0 0.0
    %1105 = vmatprep.subr.mxu0 0.0
    %1106 = vmatpush2.msra.mxu0 0.0
    %1107 = vmatprep.subr.mxu0 0.0
    %1108 = vmatpush2.msra.mxu0 0.0
    %1109 = vmatprep.subr.mxu0 0.0
    %1110 = vmatpush2.msra.mxu0 0.0
    %1111 = vmatprep.subr.mxu0 0.0
    %1112 = vmatpush2.msra.mxu0 0.0
    %1113 = vmatprep.subr.mxu0 0.0
    %1114 = vmatpush2.msra.mxu0 0.0
    %1115 = vmatprep.subr.mxu0 0.0
    %1116 = vmatpush2.msra.mxu0 0.0
    %1117 = vmatprep.subr.mxu0 0.0
    %1118 = vmatpush2.msra.mxu0 0.0
    %1119 = vmatprep.subr.mxu0 0.0
    %1120 = vmatpush2.msra.mxu0 0.0
    %1121 = vmatprep.subr.mxu0 0.0
    %1122 = vmatpush2.msra.mxu0 0.0
    %1123 = vmatprep.subr.mxu0 0.0
    %1124 = vmatpush2.msra.mxu0 0.0
    %1125 = vmatprep.subr.mxu0 0.0
    %1126 = vmatpush2.msra.mxu0 0.0
    %1127 = vmatprep.subr.mxu0 0.0
    %1128 = vmatpush2.msra.mxu0 0.0
    %1129 = vmatprep.subr.mxu0 0.0
    %1130 = vmatpush2.msra.mxu0 0.0
    %1131 = vmatprep.subr.mxu0 0.0
    %1132 = vmatpush2.msra.mxu0 0.0
    %1133 = vmatprep.subr.mxu0 0.0
    %1134 = vmatpush2.msra.mxu0 0.0
    %1135 = vmatprep.mubr.f32.mxu0 0.0
    %1136 = vmatmul.mubr.f32.gmra.mxu0 %v1069
    %v1137 = vpop.f32.mrf.mxu0
    %v1138 = vadd.f32 0.0, %v1137
    %v1139 = vpop.f32.mrf.mxu0
    %v1140 = vadd.f32 0.0, %v1139
    %1141 = vdwg.mxu0
    %1142 = vmatprep.subr.mxu0 %v335
    %1143 = vmatpush1.msra.mxu0 %v334
    %1144 = vmatprep.subr.mxu0 %v331
    %1145 = vmatpush1.msra.mxu0 %v330
    %1146 = vmatprep.subr.mxu0 %v327
    %1147 = vmatpush1.msra.mxu0 %v326
    %1148 = vmatprep.subr.mxu0 %v323
    %1149 = vmatpush1.msra.mxu0 %v322
    %1150 = vmatprep.subr.mxu0 %v319
    %1151 = vmatpush1.msra.mxu0 %v318
    %1152 = vmatprep.subr.mxu0 %v315
    %1153 = vmatpush1.msra.mxu0 %v314
    %1154 = vmatprep.subr.mxu0 %v311
    %1155 = vmatpush1.msra.mxu0 %v310
    %1156 = vmatprep.subr.mxu0 %v307
    %1157 = vmatpush1.msra.mxu0 %v306
    %1158 = vmatprep.subr.mxu0 %v303
    %1159 = vmatpush1.msra.mxu0 %v302
    %1160 = vmatprep.subr.mxu0 %v299
    %1161 = vmatpush1.msra.mxu0 %v298
    %1162 = vmatprep.subr.mxu0 %v295
    %1163 = vmatpush1.msra.mxu0 %v294
    %1164 = vmatprep.subr.mxu0 %v291
    %1165 = vmatpush1.msra.mxu0 %v290
    %1166 = vmatprep.subr.mxu0 %v287
    %1167 = vmatpush1.msra.mxu0 %v286
    %1168 = vmatprep.subr.mxu0 %v283
    %1169 = vmatpush1.msra.mxu0 %v282
    %1170 = vmatprep.subr.mxu0 %v279
    %1171 = vmatpush1.msra.mxu0 %v278
    %1172 = vmatprep.subr.mxu0 %v275
    %1173 = vmatpush1.msra.mxu0 %v274
    %1174 = vmatprep.subr.mxu0 0.0
    %1175 = vmatpush2.msra.mxu0 0.0
    %1176 = vmatprep.subr.mxu0 0.0
    %1177 = vmatpush2.msra.mxu0 0.0
    %1178 = vmatprep.subr.mxu0 0.0
    %1179 = vmatpush2.msra.mxu0 0.0
    %1180 = vmatprep.subr.mxu0 0.0
    %1181 = vmatpush2.msra.mxu0 0.0
    %1182 = vmatprep.subr.mxu0 0.0
    %1183 = vmatpush2.msra.mxu0 0.0
    %1184 = vmatprep.subr.mxu0 0.0
    %1185 = vmatpush2.msra.mxu0 0.0
    %1186 = vmatprep.subr.mxu0 0.0
    %1187 = vmatpush2.msra.mxu0 0.0
    %1188 = vmatprep.subr.mxu0 0.0
    %1189 = vmatpush2.msra.mxu0 0.0
    %1190 = vmatprep.subr.mxu0 0.0
    %1191 = vmatpush2.msra.mxu0 0.0
    %1192 = vmatprep.subr.mxu0 0.0
    %1193 = vmatpush2.msra.mxu0 0.0
    %1194 = vmatprep.subr.mxu0 0.0
    %1195 = vmatpush2.msra.mxu0 0.0
    %1196 = vmatprep.subr.mxu0 0.0
    %1197 = vmatpush2.msra.mxu0 0.0
    %1198 = vmatprep.subr.mxu0 0.0
    %1199 = vmatpush2.msra.mxu0 0.0
    %1200 = vmatprep.subr.mxu0 0.0
    %1201 = vmatpush2.msra.mxu0 0.0
    %1202 = vmatprep.subr.mxu0 0.0
    %1203 = vmatpush2.msra.mxu0 0.0
    %1204 = vmatprep.subr.mxu0 0.0
    %1205 = vmatpush2.msra.mxu0 0.0
    %1206 = vmatprep.mubr.f32.mxu0 0.0
    %1207 = vmatmul.mubr.f32.gmra.mxu0 %v1069
    %v1208 = vpop.f32.mrf.mxu0
    %v1209 = vadd.f32 0.0, %v1208
    %v1210 = vpop.f32.mrf.mxu0
    %v1211 = vadd.f32 0.0, %v1210
    %1212 = vdwg.mxu0
    %v1213 = vadd.f32 %v1064, %v1138
    %v1214 = vadd.f32 %v1065, %v1140
    %v1215 = vadd.f32 %v1066, %v1209
    %v1216 = vadd.f32 %v1067, %v1211
    %v1217 = vxor.u32 %v1213, 2147483648
    %v1218 = vxor.u32 %v1214, 2147483648
    %v1219 = vxor.u32 %v1215, 2147483648
    %v1220 = vmul.f32 %v1217, 1.442695
    %v1221 = vpow.pop %v1220
    %v1222 = vmul.f32 %v1218, 1.442695
    %v1223 = vpow.pop %v1222
    %v1224 = vmul.f32 %v1219, 1.442695
    %v1225 = vpow.pop %v1224
    %v1226 = vadd.f32 %v1221, 1.0
    %v1227 = vadd.f32 %v1223, 1.0
    %v1228 = vadd.f32 %v1225, 1.0
    %v1229 = vrcp.pop %v1226
    %v1230 = vmul.f32 1.0, %v1229
    %v1231 = vrcp.pop %v1227
    %v1232 = vmul.f32 1.0, %v1231
    %v1233 = vrcp.pop %v1228
    %v1234 = vmul.f32 1.0, %v1233
    %v1235 = vtanh.pop %v1216
    %v1237 = vrot.slane %v1061, 4
    %v1239 = vmul.f32 %v1232, %v1237
    %v1240 = vmul.f32 %v1230, %v1235
    %v1241 = vadd.f32 %v1239, %v1240
    %v1242 = vtanh.pop %v1241
    %v1243 = vmul.f32 %v1234, %v1242
    %v1244 = vld [vmem:[#allocation2 + $0x40] sm:$0xf0]
    %v1245 = vld [vmem:[#allocation2 + $0x48] sm:$0xf0]
    %v1246 = vld [vmem:[#allocation2 + $0x50] sm:$0xf0]
    %v1247 = vld [vmem:[#allocation2 + $0x58] sm:$0xf0]
    %1248 = vmatprep.subr.mxu0 %v333
    %1249 = vmatpush1.msra.mxu0 %v332
    %1250 = vmatprep.subr.mxu0 %v329
    %1251 = vmatpush1.msra.mxu0 %v328
    %1252 = vmatprep.subr.mxu0 %v325
    %1253 = vmatpush1.msra.mxu0 %v324
    %1254 = vmatprep.subr.mxu0 %v321
    %1255 = vmatpush1.msra.mxu0 %v320
    %1256 = vmatprep.subr.mxu0 %v317
    %1257 = vmatpush1.msra.mxu0 %v316
    %1258 = vmatprep.subr.mxu0 %v313
    %1259 = vmatpush1.msra.mxu0 %v312
    %1260 = vmatprep.subr.mxu0 %v309
    %1261 = vmatpush1.msra.mxu0 %v308
    %1262 = vmatprep.subr.mxu0 %v305
    %1263 = vmatpush1.msra.mxu0 %v304
    %1264 = vmatprep.subr.mxu0 %v301
    %1265 = vmatpush1.msra.mxu0 %v300
    %1266 = vmatprep.subr.mxu0 %v297
    %1267 = vmatpush1.msra.mxu0 %v296
    %1268 = vmatprep.subr.mxu0 %v293
    %1269 = vmatpush1.msra.mxu0 %v292
    %1270 = vmatprep.subr.mxu0 %v289
    %1271 = vmatpush1.msra.mxu0 %v288
    %1272 = vmatprep.subr.mxu0 %v285
    %1273 = vmatpush1.msra.mxu0 %v284
    %1274 = vmatprep.subr.mxu0 %v281
    %1275 = vmatpush1.msra.mxu0 %v280
    %1276 = vmatprep.subr.mxu0 %v277
    %1277 = vmatpush1.msra.mxu0 %v276
    %1278 = vmatprep.subr.mxu0 %v273
    %1279 = vmatpush1.msra.mxu0 %v272
    %1280 = vmatprep.subr.mxu0 0.0
    %1281 = vmatpush2.msra.mxu0 0.0
    %1282 = vmatprep.subr.mxu0 0.0
    %1283 = vmatpush2.msra.mxu0 0.0
    %1284 = vmatprep.subr.mxu0 0.0
    %1285 = vmatpush2.msra.mxu0 0.0
    %1286 = vmatprep.subr.mxu0 0.0
    %1287 = vmatpush2.msra.mxu0 0.0
    %1288 = vmatprep.subr.mxu0 0.0
    %1289 = vmatpush2.msra.mxu0 0.0
    %1290 = vmatprep.subr.mxu0 0.0
    %1291 = vmatpush2.msra.mxu0 0.0
    %1292 = vmatprep.subr.mxu0 0.0
    %1293 = vmatpush2.msra.mxu0 0.0
    %1294 = vmatprep.subr.mxu0 0.0
    %1295 = vmatpush2.msra.mxu0 0.0
    %1296 = vmatprep.subr.mxu0 0.0
    %1297 = vmatpush2.msra.mxu0 0.0
    %1298 = vmatprep.subr.mxu0 0.0
    %1299 = vmatpush2.msra.mxu0 0.0
    %1300 = vmatprep.subr.mxu0 0.0
    %1301 = vmatpush2.msra.mxu0 0.0
    %1302 = vmatprep.subr.mxu0 0.0
    %1303 = vmatpush2.msra.mxu0 0.0
    %1304 = vmatprep.subr.mxu0 0.0
    %1305 = vmatpush2.msra.mxu0 0.0
    %1306 = vmatprep.subr.mxu0 0.0
    %1307 = vmatpush2.msra.mxu0 0.0
    %1308 = vmatprep.subr.mxu0 0.0
    %1309 = vmatpush2.msra.mxu0 0.0
    %1310 = vmatprep.subr.mxu0 0.0
    %1311 = vmatpush2.msra.mxu0 0.0
    %1312 = vmatprep.mubr.f32.mxu0 0.0
    %1313 = vmatmul.mubr.f32.gmra.mxu0 %v1243
    %v1314 = vpop.f32.mrf.mxu0
    %v1315 = vadd.f32 0.0, %v1314
    %v1316 = vpop.f32.mrf.mxu0
    %v1317 = vadd.f32 0.0, %v1316
    %1318 = vdwg.mxu0
    %1319 = vmatprep.subr.mxu0 %v335
    %1320 = vmatpush1.msra.mxu0 %v334
    %1321 = vmatprep.subr.mxu0 %v331
    %1322 = vmatpush1.msra.mxu0 %v330
    %1323 = vmatprep.subr.mxu0 %v327
    %1324 = vmatpush1.msra.mxu0 %v326
    %1325 = vmatprep.subr.mxu0 %v323
    %1326 = vmatpush1.msra.mxu0 %v322
    %1327 = vmatprep.subr.mxu0 %v319
    %1328 = vmatpush1.msra.mxu0 %v318
    %1329 = vmatprep.subr.mxu0 %v315
    %1330 = vmatpush1.msra.mxu0 %v314
    %1331 = vmatprep.subr.mxu0 %v311
    %1332 = vmatpush1.msra.mxu0 %v310
    %1333 = vmatprep.subr.mxu0 %v307
    %1334 = vmatpush1.msra.mxu0 %v306
    %1335 = vmatprep.subr.mxu0 %v303
    %1336 = vmatpush1.msra.mxu0 %v302
    %1337 = vmatprep.subr.mxu0 %v299
    %1338 = vmatpush1.msra.mxu0 %v298
    %1339 = vmatprep.subr.mxu0 %v295
    %1340 = vmatpush1.msra.mxu0 %v294
    %1341 = vmatprep.subr.mxu0 %v291
    %1342 = vmatpush1.msra.mxu0 %v290
    %1343 = vmatprep.subr.mxu0 %v287
    %1344 = vmatpush1.msra.mxu0 %v286
    %1345 = vmatprep.subr.mxu0 %v283
    %1346 = vmatpush1.msra.mxu0 %v282
    %1347 = vmatprep.subr.mxu0 %v279
    %1348 = vmatpush1.msra.mxu0 %v278
    %1349 = vmatprep.subr.mxu0 %v275
    %1350 = vmatpush1.msra.mxu0 %v274
    %1351 = vmatprep.subr.mxu0 0.0
    %1352 = vmatpush2.msra.mxu0 0.0
    %1353 = vmatprep.subr.mxu0 0.0
    %1354 = vmatpush2.msra.mxu0 0.0
    %1355 = vmatprep.subr.mxu0 0.0
    %1356 = vmatpush2.msra.mxu0 0.0
    %1357 = vmatprep.subr.mxu0 0.0
    %1358 = vmatpush2.msra.mxu0 0.0
    %1359 = vmatprep.subr.mxu0 0.0
    %1360 = vmatpush2.msra.mxu0 0.0
    %1361 = vmatprep.subr.mxu0 0.0
    %1362 = vmatpush2.msra.mxu0 0.0
    %1363 = vmatprep.subr.mxu0 0.0
    %1364 = vmatpush2.msra.mxu0 0.0
    %1365 = vmatprep.subr.mxu0 0.0
    %1366 = vmatpush2.msra.mxu0 0.0
    %1367 = vmatprep.subr.mxu0 0.0
    %1368 = vmatpush2.msra.mxu0 0.0
    %1369 = vmatprep.subr.mxu0 0.0
    %1370 = vmatpush2.msra.mxu0 0.0
    %1371 = vmatprep.subr.mxu0 0.0
    %1372 = vmatpush2.msra.mxu0 0.0
    %1373 = vmatprep.subr.mxu0 0.0
    %1374 = vmatpush2.msra.mxu0 0.0
    %1375 = vmatprep.subr.mxu0 0.0
    %1376 = vmatpush2.msra.mxu0 0.0
    %1377 = vmatprep.subr.mxu0 0.0
    %1378 = vmatpush2.msra.mxu0 0.0
    %1379 = vmatprep.subr.mxu0 0.0
    %1380 = vmatpush2.msra.mxu0 0.0
    %1381 = vmatprep.subr.mxu0 0.0
    %1382 = vmatpush2.msra.mxu0 0.0
    %1383 = vmatprep.mubr.f32.mxu0 0.0
    %1384 = vmatmul.mubr.f32.gmra.mxu0 %v1243
    %v1385 = vpop.f32.mrf.mxu0
    %v1386 = vadd.f32 0.0, %v1385
    %v1387 = vpop.f32.mrf.mxu0
    %v1388 = vadd.f32 0.0, %v1387
    %1389 = vdwg.mxu0
    %v1394 = vrot.slane %v1315, 4
    %v1395 = vrot.slane %v1317, 4
    %v1396 = vrot.slane %v1386, 4
    %v1397 = vrot.slane %v1388, 4
    %v1402 = vadd.f32 %v1244, %v1394
    %v1403 = vadd.f32 %v1245, %v1395
    %v1404 = vadd.f32 %v1246, %v1396
    %v1405 = vadd.f32 %v1247, %v1397
    %v1406 = vxor.u32 %v1402, 2147483648
    %v1407 = vxor.u32 %v1403, 2147483648
    %v1408 = vxor.u32 %v1404, 2147483648
    %v1409 = vmul.f32 %v1406, 1.442695
    %v1410 = vpow.pop %v1409
    %v1411 = vmul.f32 %v1407, 1.442695
    %v1412 = vpow.pop %v1411
    %v1413 = vmul.f32 %v1408, 1.442695
    %v1414 = vpow.pop %v1413
    %v1415 = vadd.f32 %v1410, 1.0
    %v1416 = vadd.f32 %v1412, 1.0
    %v1417 = vadd.f32 %v1414, 1.0
    %v1418 = vrcp.pop %v1415
    %v1419 = vmul.f32 1.0, %v1418
    %v1420 = vrcp.pop %v1416
    %v1421 = vmul.f32 1.0, %v1420
    %v1422 = vrcp.pop %v1417
    %v1423 = vmul.f32 1.0, %v1422
    %v1424 = vtanh.pop %v1405
    %v1426 = vrot.slane %v1241, 4
    %v1428 = vmul.f32 %v1421, %v1426
    %v1429 = vmul.f32 %v1419, %v1424
    %v1430 = vadd.f32 %v1428, %v1429
    %v1431 = vtanh.pop %v1430
    %v1432 = vmul.f32 %v1423, %v1431
    %v1433 = vld [vmem:[#allocation2 + $0x60] sm:$0xf]
    %v1434 = vld [vmem:[#allocation2 + $0x68] sm:$0xf]
    %v1435 = vld [vmem:[#allocation2 + $0x70] sm:$0xf]
    %v1436 = vld [vmem:[#allocation2 + $0x78] sm:$0xf]
    %v1438 = vrot.slane %v1432, 4
    %1440 = vmatprep.subr.mxu0 %v333
    %1441 = vmatpush1.msra.mxu0 %v332
    %1442 = vmatprep.subr.mxu0 %v329
    %1443 = vmatpush1.msra.mxu0 %v328
    %1444 = vmatprep.subr.mxu0 %v325
    %1445 = vmatpush1.msra.mxu0 %v324
    %1446 = vmatprep.subr.mxu0 %v321
    %1447 = vmatpush1.msra.mxu0 %v320
    %1448 = vmatprep.subr.mxu0 %v317
    %1449 = vmatpush1.msra.mxu0 %v316
    %1450 = vmatprep.subr.mxu0 %v313
    %1451 = vmatpush1.msra.mxu0 %v312
    %1452 = vmatprep.subr.mxu0 %v309
    %1453 = vmatpush1.msra.mxu0 %v308
    %1454 = vmatprep.subr.mxu0 %v305
    %1455 = vmatpush1.msra.mxu0 %v304
    %1456 = vmatprep.subr.mxu0 %v301
    %1457 = vmatpush1.msra.mxu0 %v300
    %1458 = vmatprep.subr.mxu0 %v297
    %1459 = vmatpush1.msra.mxu0 %v296
    %1460 = vmatprep.subr.mxu0 %v293
    %1461 = vmatpush1.msra.mxu0 %v292
    %1462 = vmatprep.subr.mxu0 %v289
    %1463 = vmatpush1.msra.mxu0 %v288
    %1464 = vmatprep.subr.mxu0 %v285
    %1465 = vmatpush1.msra.mxu0 %v284
    %1466 = vmatprep.subr.mxu0 %v281
    %1467 = vmatpush1.msra.mxu0 %v280
    %1468 = vmatprep.subr.mxu0 %v277
    %1469 = vmatpush1.msra.mxu0 %v276
    %1470 = vmatprep.subr.mxu0 %v273
    %1471 = vmatpush1.msra.mxu0 %v272
    %1472 = vmatprep.subr.mxu0 0.0
    %1473 = vmatpush2.msra.mxu0 0.0
    %1474 = vmatprep.subr.mxu0 0.0
    %1475 = vmatpush2.msra.mxu0 0.0
    %1476 = vmatprep.subr.mxu0 0.0
    %1477 = vmatpush2.msra.mxu0 0.0
    %1478 = vmatprep.subr.mxu0 0.0
    %1479 = vmatpush2.msra.mxu0 0.0
    %1480 = vmatprep.subr.mxu0 0.0
    %1481 = vmatpush2.msra.mxu0 0.0
    %1482 = vmatprep.subr.mxu0 0.0
    %1483 = vmatpush2.msra.mxu0 0.0
    %1484 = vmatprep.subr.mxu0 0.0
    %1485 = vmatpush2.msra.mxu0 0.0
    %1486 = vmatprep.subr.mxu0 0.0
    %1487 = vmatpush2.msra.mxu0 0.0
    %1488 = vmatprep.subr.mxu0 0.0
    %1489 = vmatpush2.msra.mxu0 0.0
    %1490 = vmatprep.subr.mxu0 0.0
    %1491 = vmatpush2.msra.mxu0 0.0
    %1492 = vmatprep.subr.mxu0 0.0
    %1493 = vmatpush2.msra.mxu0 0.0
    %1494 = vmatprep.subr.mxu0 0.0
    %1495 = vmatpush2.msra.mxu0 0.0
    %1496 = vmatprep.subr.mxu0 0.0
    %1497 = vmatpush2.msra.mxu0 0.0
    %1498 = vmatprep.subr.mxu0 0.0
    %1499 = vmatpush2.msra.mxu0 0.0
    %1500 = vmatprep.subr.mxu0 0.0
    %1501 = vmatpush2.msra.mxu0 0.0
    %1502 = vmatprep.subr.mxu0 0.0
    %1503 = vmatpush2.msra.mxu0 0.0
    %1504 = vmatprep.mubr.f32.mxu0 0.0
    %1505 = vmatmul.mubr.f32.gmra.mxu0 %v1438
    %v1506 = vpop.f32.mrf.mxu0
    %v1507 = vadd.f32 0.0, %v1506
    %v1508 = vpop.f32.mrf.mxu0
    %v1509 = vadd.f32 0.0, %v1508
    %1510 = vdwg.mxu0
    %1511 = vmatprep.subr.mxu0 %v335
    %1512 = vmatpush1.msra.mxu0 %v334
    %1513 = vmatprep.subr.mxu0 %v331
    %1514 = vmatpush1.msra.mxu0 %v330
    %1515 = vmatprep.subr.mxu0 %v327
    %1516 = vmatpush1.msra.mxu0 %v326
    %1517 = vmatprep.subr.mxu0 %v323
    %1518 = vmatpush1.msra.mxu0 %v322
    %1519 = vmatprep.subr.mxu0 %v319
    %1520 = vmatpush1.msra.mxu0 %v318
    %1521 = vmatprep.subr.mxu0 %v315
    %1522 = vmatpush1.msra.mxu0 %v314
    %1523 = vmatprep.subr.mxu0 %v311
    %1524 = vmatpush1.msra.mxu0 %v310
    %1525 = vmatprep.subr.mxu0 %v307
    %1526 = vmatpush1.msra.mxu0 %v306
    %1527 = vmatprep.subr.mxu0 %v303
    %1528 = vmatpush1.msra.mxu0 %v302
    %1529 = vmatprep.subr.mxu0 %v299
    %1530 = vmatpush1.msra.mxu0 %v298
    %1531 = vmatprep.subr.mxu0 %v295
    %1532 = vmatpush1.msra.mxu0 %v294
    %1533 = vmatprep.subr.mxu0 %v291
    %1534 = vmatpush1.msra.mxu0 %v290
    %1535 = vmatprep.subr.mxu0 %v287
    %1536 = vmatpush1.msra.mxu0 %v286
    %1537 = vmatprep.subr.mxu0 %v283
    %1538 = vmatpush1.msra.mxu0 %v282
    %1539 = vmatprep.subr.mxu0 %v279
    %1540 = vmatpush1.msra.mxu0 %v278
    %1541 = vmatprep.subr.mxu0 %v275
    %1542 = vmatpush1.msra.mxu0 %v274
    %1543 = vmatprep.subr.mxu0 0.0
    %1544 = vmatpush2.msra.mxu0 0.0
    %1545 = vmatprep.subr.mxu0 0.0
    %1546 = vmatpush2.msra.mxu0 0.0
    %1547 = vmatprep.subr.mxu0 0.0
    %1548 = vmatpush2.msra.mxu0 0.0
    %1549 = vmatprep.subr.mxu0 0.0
    %1550 = vmatpush2.msra.mxu0 0.0
    %1551 = vmatprep.subr.mxu0 0.0
    %1552 = vmatpush2.msra.mxu0 0.0
    %1553 = vmatprep.subr.mxu0 0.0
    %1554 = vmatpush2.msra.mxu0 0.0
    %1555 = vmatprep.subr.mxu0 0.0
    %1556 = vmatpush2.msra.mxu0 0.0
    %1557 = vmatprep.subr.mxu0 0.0
    %1558 = vmatpush2.msra.mxu0 0.0
    %1559 = vmatprep.subr.mxu0 0.0
    %1560 = vmatpush2.msra.mxu0 0.0
    %1561 = vmatprep.subr.mxu0 0.0
    %1562 = vmatpush2.msra.mxu0 0.0
    %1563 = vmatprep.subr.mxu0 0.0
    %1564 = vmatpush2.msra.mxu0 0.0
    %1565 = vmatprep.subr.mxu0 0.0
    %1566 = vmatpush2.msra.mxu0 0.0
    %1567 = vmatprep.subr.mxu0 0.0
    %1568 = vmatpush2.msra.mxu0 0.0
    %1569 = vmatprep.subr.mxu0 0.0
    %1570 = vmatpush2.msra.mxu0 0.0
    %1571 = vmatprep.subr.mxu0 0.0
    %1572 = vmatpush2.msra.mxu0 0.0
    %1573 = vmatprep.subr.mxu0 0.0
    %1574 = vmatpush2.msra.mxu0 0.0
    %1575 = vmatprep.mubr.f32.mxu0 0.0
    %1576 = vmatmul.mubr.f32.gmra.mxu0 %v1438
    %v1577 = vpop.f32.mrf.mxu0
    %v1578 = vadd.f32 0.0, %v1577
    %v1579 = vpop.f32.mrf.mxu0
    %v1580 = vadd.f32 0.0, %v1579
    %1581 = vdwg.mxu0
    %v1582 = vadd.f32 %v1433, %v1507
    %v1583 = vadd.f32 %v1434, %v1509
    %v1584 = vadd.f32 %v1435, %v1578
    %v1585 = vadd.f32 %v1436, %v1580
    %v1586 = vxor.u32 %v1582, 2147483648
    %v1587 = vxor.u32 %v1583, 2147483648
    %v1588 = vxor.u32 %v1584, 2147483648
    %v1589 = vmul.f32 %v1586, 1.442695
    %v1590 = vpow.pop %v1589
    %v1591 = vmul.f32 %v1587, 1.442695
    %v1592 = vpow.pop %v1591
    %v1593 = vmul.f32 %v1588, 1.442695
    %v1594 = vpow.pop %v1593
    %v1595 = vadd.f32 %v1590, 1.0
    %v1596 = vadd.f32 %v1592, 1.0
    %v1597 = vadd.f32 %v1594, 1.0
    %v1598 = vrcp.pop %v1595
    %v1599 = vmul.f32 1.0, %v1598
    %v1600 = vrcp.pop %v1596
    %v1601 = vmul.f32 1.0, %v1600
    %v1602 = vrcp.pop %v1597
    %v1603 = vmul.f32 1.0, %v1602
    %v1604 = vtanh.pop %v1585
    %v1606 = vrot.slane %v1430, 4
    %v1608 = vmul.f32 %v1601, %v1606
    %v1609 = vmul.f32 %v1599, %v1604
    %v1610 = vadd.f32 %v1608, %v1609
    %v1611 = vtanh.pop %v1610
    %v1612 = vmul.f32 %v1603, %v1611
    %v1613 = vld [vmem:[#allocation2 + $0x60] sm:$0xf0]
    %v1614 = vld [vmem:[#allocation2 + $0x68] sm:$0xf0]
    %v1615 = vld [vmem:[#allocation2 + $0x70] sm:$0xf0]
    %v1616 = vld [vmem:[#allocation2 + $0x78] sm:$0xf0]
    %1617 = vmatprep.subr.mxu0 %v333
    %1618 = vmatpush1.msra.mxu0 %v332
    %1619 = vmatprep.subr.mxu0 %v329
    %1620 = vmatpush1.msra.mxu0 %v328
    %1621 = vmatprep.subr.mxu0 %v325
    %1622 = vmatpush1.msra.mxu0 %v324
    %1623 = vmatprep.subr.mxu0 %v321
    %1624 = vmatpush1.msra.mxu0 %v320
    %1625 = vmatprep.subr.mxu0 %v317
    %1626 = vmatpush1.msra.mxu0 %v316
    %1627 = vmatprep.subr.mxu0 %v313
    %1628 = vmatpush1.msra.mxu0 %v312
    %1629 = vmatprep.subr.mxu0 %v309
    %1630 = vmatpush1.msra.mxu0 %v308
    %1631 = vmatprep.subr.mxu0 %v305
    %1632 = vmatpush1.msra.mxu0 %v304
    %1633 = vmatprep.subr.mxu0 %v301
    %1634 = vmatpush1.msra.mxu0 %v300
    %1635 = vmatprep.subr.mxu0 %v297
    %1636 = vmatpush1.msra.mxu0 %v296
    %1637 = vmatprep.subr.mxu0 %v293
    %1638 = vmatpush1.msra.mxu0 %v292
    %1639 = vmatprep.subr.mxu0 %v289
    %1640 = vmatpush1.msra.mxu0 %v288
    %1641 = vmatprep.subr.mxu0 %v285
    %1642 = vmatpush1.msra.mxu0 %v284
    %1643 = vmatprep.subr.mxu0 %v281
    %1644 = vmatpush1.msra.mxu0 %v280
    %1645 = vmatprep.subr.mxu0 %v277
    %1646 = vmatpush1.msra.mxu0 %v276
    %1647 = vmatprep.subr.mxu0 %v273
    %1648 = vmatpush1.msra.mxu0 %v272
    %1649 = vmatprep.subr.mxu0 0.0
    %1650 = vmatpush2.msra.mxu0 0.0
    %1651 = vmatprep.subr.mxu0 0.0
    %1652 = vmatpush2.msra.mxu0 0.0
    %1653 = vmatprep.subr.mxu0 0.0
    %1654 = vmatpush2.msra.mxu0 0.0
    %1655 = vmatprep.subr.mxu0 0.0
    %1656 = vmatpush2.msra.mxu0 0.0
    %1657 = vmatprep.subr.mxu0 0.0
    %1658 = vmatpush2.msra.mxu0 0.0
    %1659 = vmatprep.subr.mxu0 0.0
    %1660 = vmatpush2.msra.mxu0 0.0
    %1661 = vmatprep.subr.mxu0 0.0
    %1662 = vmatpush2.msra.mxu0 0.0
    %1663 = vmatprep.subr.mxu0 0.0
    %1664 = vmatpush2.msra.mxu0 0.0
    %1665 = vmatprep.subr.mxu0 0.0
    %1666 = vmatpush2.msra.mxu0 0.0
    %1667 = vmatprep.subr.mxu0 0.0
    %1668 = vmatpush2.msra.mxu0 0.0
    %1669 = vmatprep.subr.mxu0 0.0
    %1670 = vmatpush2.msra.mxu0 0.0
    %1671 = vmatprep.subr.mxu0 0.0
    %1672 = vmatpush2.msra.mxu0 0.0
    %1673 = vmatprep.subr.mxu0 0.0
    %1674 = vmatpush2.msra.mxu0 0.0
    %1675 = vmatprep.subr.mxu0 0.0
    %1676 = vmatpush2.msra.mxu0 0.0
    %1677 = vmatprep.subr.mxu0 0.0
    %1678 = vmatpush2.msra.mxu0 0.0
    %1679 = vmatprep.subr.mxu0 0.0
    %1680 = vmatpush2.msra.mxu0 0.0
    %1681 = vmatprep.mubr.f32.mxu0 0.0
    %1682 = vmatmul.mubr.f32.gmra.mxu0 %v1612
    %v1683 = vpop.f32.mrf.mxu0
    %v1684 = vadd.f32 0.0, %v1683
    %v1685 = vpop.f32.mrf.mxu0
    %v1686 = vadd.f32 0.0, %v1685
    %1687 = vdwg.mxu0
    %1688 = vmatprep.subr.mxu0 %v335
    %1689 = vmatpush1.msra.mxu0 %v334
    %1690 = vmatprep.subr.mxu0 %v331
    %1691 = vmatpush1.msra.mxu0 %v330
    %1692 = vmatprep.subr.mxu0 %v327
    %1693 = vmatpush1.msra.mxu0 %v326
    %1694 = vmatprep.subr.mxu0 %v323
    %1695 = vmatpush1.msra.mxu0 %v322
    %1696 = vmatprep.subr.mxu0 %v319
    %1697 = vmatpush1.msra.mxu0 %v318
    %1698 = vmatprep.subr.mxu0 %v315
    %1699 = vmatpush1.msra.mxu0 %v314
    %1700 = vmatprep.subr.mxu0 %v311
    %1701 = vmatpush1.msra.mxu0 %v310
    %1702 = vmatprep.subr.mxu0 %v307
    %1703 = vmatpush1.msra.mxu0 %v306
    %1704 = vmatprep.subr.mxu0 %v303
    %1705 = vmatpush1.msra.mxu0 %v302
    %1706 = vmatprep.subr.mxu0 %v299
    %1707 = vmatpush1.msra.mxu0 %v298
    %1708 = vmatprep.subr.mxu0 %v295
    %1709 = vmatpush1.msra.mxu0 %v294
    %1710 = vmatprep.subr.mxu0 %v291
    %1711 = vmatpush1.msra.mxu0 %v290
    %1712 = vmatprep.subr.mxu0 %v287
    %1713 = vmatpush1.msra.mxu0 %v286
    %1714 = vmatprep.subr.mxu0 %v283
    %1715 = vmatpush1.msra.mxu0 %v282
    %1716 = vmatprep.subr.mxu0 %v279
    %1717 = vmatpush1.msra.mxu0 %v278
    %1718 = vmatprep.subr.mxu0 %v275
    %1719 = vmatpush1.msra.mxu0 %v274
    %1720 = vmatprep.subr.mxu0 0.0
    %1721 = vmatpush2.msra.mxu0 0.0
    %1722 = vmatprep.subr.mxu0 0.0
    %1723 = vmatpush2.msra.mxu0 0.0
    %1724 = vmatprep.subr.mxu0 0.0
    %1725 = vmatpush2.msra.mxu0 0.0
    %1726 = vmatprep.subr.mxu0 0.0
    %1727 = vmatpush2.msra.mxu0 0.0
    %1728 = vmatprep.subr.mxu0 0.0
    %1729 = vmatpush2.msra.mxu0 0.0
    %1730 = vmatprep.subr.mxu0 0.0
    %1731 = vmatpush2.msra.mxu0 0.0
    %1732 = vmatprep.subr.mxu0 0.0
    %1733 = vmatpush2.msra.mxu0 0.0
    %1734 = vmatprep.subr.mxu0 0.0
    %1735 = vmatpush2.msra.mxu0 0.0
    %1736 = vmatprep.subr.mxu0 0.0
    %1737 = vmatpush2.msra.mxu0 0.0
    %1738 = vmatprep.subr.mxu0 0.0
    %1739 = vmatpush2.msra.mxu0 0.0
    %1740 = vmatprep.subr.mxu0 0.0
    %1741 = vmatpush2.msra.mxu0 0.0
    %1742 = vmatprep.subr.mxu0 0.0
    %1743 = vmatpush2.msra.mxu0 0.0
    %1744 = vmatprep.subr.mxu0 0.0
    %1745 = vmatpush2.msra.mxu0 0.0
    %1746 = vmatprep.subr.mxu0 0.0
    %1747 = vmatpush2.msra.mxu0 0.0
    %1748 = vmatprep.subr.mxu0 0.0
    %1749 = vmatpush2.msra.mxu0 0.0
    %1750 = vmatprep.subr.mxu0 0.0
    %1751 = vmatpush2.msra.mxu0 0.0
    %1752 = vmatprep.mubr.f32.mxu0 0.0
    %1753 = vmatmul.mubr.f32.gmra.mxu0 %v1612
    %v1754 = vpop.f32.mrf.mxu0
    %v1755 = vadd.f32 0.0, %v1754
    %v1756 = vpop.f32.mrf.mxu0
    %v1757 = vadd.f32 0.0, %v1756
    %1758 = vdwg.mxu0
    %v1763 = vrot.slane %v1684, 4
    %v1764 = vrot.slane %v1686, 4
    %v1765 = vrot.slane %v1755, 4
    %v1766 = vrot.slane %v1757, 4
    %v1771 = vadd.f32 %v1613, %v1763
    %v1772 = vadd.f32 %v1614, %v1764
    %v1773 = vadd.f32 %v1615, %v1765
    %v1774 = vadd.f32 %v1616, %v1766
    %v1775 = vxor.u32 %v1771, 2147483648
    %v1776 = vxor.u32 %v1772, 2147483648
    %v1777 = vxor.u32 %v1773, 2147483648
    %v1778 = vmul.f32 %v1775, 1.442695
    %v1779 = vpow.pop %v1778
    %v1780 = vmul.f32 %v1776, 1.442695
    %v1781 = vpow.pop %v1780
    %v1782 = vmul.f32 %v1777, 1.442695
    %v1783 = vpow.pop %v1782
    %v1784 = vadd.f32 %v1779, 1.0
    %v1785 = vadd.f32 %v1781, 1.0
    %v1786 = vadd.f32 %v1783, 1.0
    %v1787 = vrcp.pop %v1784
    %v1788 = vmul.f32 1.0, %v1787
    %v1789 = vrcp.pop %v1785
    %v1790 = vmul.f32 1.0, %v1789
    %v1791 = vrcp.pop %v1786
    %v1792 = vmul.f32 1.0, %v1791
    %v1793 = vtanh.pop %v1774
    %v1795 = vrot.slane %v1610, 4
    %v1797 = vmul.f32 %v1790, %v1795
    %v1798 = vmul.f32 %v1788, %v1793
    %v1799 = vadd.f32 %v1797, %v1798
    %v1800 = vtanh.pop %v1799
    %v1801 = vmul.f32 %v1792, %v1800
    %v1802 = vld [vmem:[%s3] sm:$0xff]
    %v1803 = vld [vmem:[%s3 + $0x8] sm:$0xff]
    %v1804 = vld [vmem:[%s3 + $0x10] sm:$0xff]
    %v1805 = vld [vmem:[%s3 + $0x18] sm:$0xff]
    %v1806 = vld [vmem:[%s3 + $0x20] sm:$0xff]
    %v1807 = vld [vmem:[%s3 + $0x28] sm:$0xff]
    %v1808 = vld [vmem:[%s3 + $0x30] sm:$0xff]
    %v1809 = vld [vmem:[%s3 + $0x38] sm:$0xff]
    %v1810 = vld [vmem:[%s3 + $0x40] sm:$0xff]
    %v1811 = vld [vmem:[%s3 + $0x48] sm:$0xff]
    %v1812 = vld [vmem:[%s3 + $0x50] sm:$0xff]
    %v1813 = vld [vmem:[%s3 + $0x58] sm:$0xff]
    %v1814 = vld [vmem:[%s3 + $0x60] sm:$0xff]
    %v1815 = vld [vmem:[%s3 + $0x68] sm:$0xff]
    %v1816 = vld [vmem:[%s3 + $0x70] sm:$0xff]
    %v1817 = vld [vmem:[%s3 + $0x78] sm:$0xff]
    %v1818 = vld [vmem:[%s3 + $0x80] sm:$0x1]
    %v1819 = vld [vmem:[%s3 + $0x88] sm:$0xff]
    %v1820 = vld [vmem:[%s3 + $0x90] sm:$0xff]
    %v1821 = vld [vmem:[%s3 + $0x98] sm:$0x1]
    %v1822 = vlaneseq
    %v1823 = vshrl.u32 %v1822, 7
    %v1824 = vsub.s32 0, %v1823
    %v1825 = vrot.slane %v1818, %v1824
    %v1827 = vrot.slane %v1801, 4
    %1829 = vmatprep.subr.mxu0 0.0
    %1830 = vmatpush1.msra.mxu0 %v1817
    %1831 = vmatprep.subr.mxu0 0.0
    %1832 = vmatpush1.msra.mxu0 %v1816
    %1833 = vmatprep.subr.mxu0 0.0
    %1834 = vmatpush1.msra.mxu0 %v1815
    %1835 = vmatprep.subr.mxu0 0.0
    %1836 = vmatpush1.msra.mxu0 %v1814
    %1837 = vmatprep.subr.mxu0 0.0
    %1838 = vmatpush1.msra.mxu0 %v1813
    %1839 = vmatprep.subr.mxu0 0.0
    %1840 = vmatpush1.msra.mxu0 %v1812
    %1841 = vmatprep.subr.mxu0 0.0
    %1842 = vmatpush1.msra.mxu0 %v1811
    %1843 = vmatprep.subr.mxu0 0.0
    %1844 = vmatpush1.msra.mxu0 %v1810
    %1845 = vmatprep.subr.mxu0 0.0
    %1846 = vmatpush1.msra.mxu0 %v1809
    %1847 = vmatprep.subr.mxu0 0.0
    %1848 = vmatpush1.msra.mxu0 %v1808
    %1849 = vmatprep.subr.mxu0 0.0
    %1850 = vmatpush1.msra.mxu0 %v1807
    %1851 = vmatprep.subr.mxu0 0.0
    %1852 = vmatpush1.msra.mxu0 %v1806
    %1853 = vmatprep.subr.mxu0 0.0
    %1854 = vmatpush1.msra.mxu0 %v1805
    %1855 = vmatprep.subr.mxu0 0.0
    %1856 = vmatpush1.msra.mxu0 %v1804
    %1857 = vmatprep.subr.mxu0 0.0
    %1858 = vmatpush1.msra.mxu0 %v1803
    %1859 = vmatprep.subr.mxu0 0.0
    %1860 = vmatpush1.msra.mxu0 %v1802
    %1861 = vmatprep.subr.mxu0 0.0
    %1862 = vmatpush2.msra.mxu0 0.0
    %1863 = vmatprep.subr.mxu0 0.0
    %1864 = vmatpush2.msra.mxu0 0.0
    %1865 = vmatprep.subr.mxu0 0.0
    %1866 = vmatpush2.msra.mxu0 0.0
    %1867 = vmatprep.subr.mxu0 0.0
    %1868 = vmatpush2.msra.mxu0 0.0
    %1869 = vmatprep.subr.mxu0 0.0
    %1870 = vmatpush2.msra.mxu0 0.0
    %1871 = vmatprep.subr.mxu0 0.0
    %1872 = vmatpush2.msra.mxu0 0.0
    %1873 = vmatprep.subr.mxu0 0.0
    %1874 = vmatpush2.msra.mxu0 0.0
    %1875 = vmatprep.subr.mxu0 0.0
    %1876 = vmatpush2.msra.mxu0 0.0
    %1877 = vmatprep.subr.mxu0 0.0
    %1878 = vmatpush2.msra.mxu0 0.0
    %1879 = vmatprep.subr.mxu0 0.0
    %1880 = vmatpush2.msra.mxu0 0.0
    %1881 = vmatprep.subr.mxu0 0.0
    %1882 = vmatpush2.msra.mxu0 0.0
    %1883 = vmatprep.subr.mxu0 0.0
    %1884 = vmatpush2.msra.mxu0 0.0
    %1885 = vmatprep.subr.mxu0 0.0
    %1886 = vmatpush2.msra.mxu0 0.0
    %1887 = vmatprep.subr.mxu0 0.0
    %1888 = vmatpush2.msra.mxu0 0.0
    %1889 = vmatprep.subr.mxu0 0.0
    %1890 = vmatpush2.msra.mxu0 0.0
    %1891 = vmatprep.subr.mxu0 0.0
    %1892 = vmatpush2.msra.mxu0 0.0
    %1893 = vmatprep.mubr.f32.mxu0 0.0
    %1894 = vmatmul.mubr.f32.gmra.mxu0 %v1827
    %v1895 = vpop.f32.mrf.mxu0
    %v1896 = vadd.f32 %v1825, %v1895
    %v1897 = vpop.f32.mrf.mxu0
    %1898 = vdwg.mxu0
    %v1899 = vmax.f32 %v1896, 0.0
    %v1900 = vlaneseq
    %v1901 = vshrl.u32 %v1900, 7
    %v1902 = vsub.s32 0, %v1901
    %v1903 = vrot.slane %v1821, %v1902
    %vm1904 = vcmask 130048
    %v1906 = vsel %vm1904, %v1899, 0
    %1908 = vmatprep.subr.mxu0 0.0
    %1909 = vmatpush1.msra.mxu0 0.0
    %1910 = vmatprep.subr.mxu0 0.0
    %1911 = vmatpush1.msra.mxu0 0.0
    %1912 = vmatprep.subr.mxu0 0.0
    %1913 = vmatpush1.msra.mxu0 0.0
    %1914 = vmatprep.subr.mxu0 0.0
    %1915 = vmatpush1.msra.mxu0 0.0
    %1916 = vmatprep.subr.mxu0 0.0
    %1917 = vmatpush1.msra.mxu0 0.0
    %1918 = vmatprep.subr.mxu0 0.0
    %1919 = vmatpush1.msra.mxu0 0.0
    %1920 = vmatprep.subr.mxu0 0.0
    %1921 = vmatpush1.msra.mxu0 0.0
    %1922 = vmatprep.subr.mxu0 0.0
    %1923 = vmatpush1.msra.mxu0 0.0
    %1924 = vmatprep.subr.mxu0 0.0
    %1925 = vmatpush1.msra.mxu0 0.0
    %1926 = vmatprep.subr.mxu0 0.0
    %1927 = vmatpush1.msra.mxu0 0.0
    %1928 = vmatprep.subr.mxu0 0.0
    %1929 = vmatpush1.msra.mxu0 0.0
    %1930 = vmatprep.subr.mxu0 0.0
    %1931 = vmatpush1.msra.mxu0 0.0
    %1932 = vmatprep.subr.mxu0 0.0
    %1933 = vmatpush1.msra.mxu0 0.0
    %1934 = vmatprep.subr.mxu0 0.0
    %1935 = vmatpush1.msra.mxu0 0.0
    %1936 = vmatprep.subr.mxu0 0.0
    %1937 = vmatpush1.msra.mxu0 %v1820
    %1938 = vmatprep.subr.mxu0 0.0
    %1939 = vmatpush1.msra.mxu0 %v1819
    %1940 = vmatprep.subr.mxu0 0.0
    %1941 = vmatpush2.msra.mxu0 0.0
    %1942 = vmatprep.subr.mxu0 0.0
    %1943 = vmatpush2.msra.mxu0 0.0
    %1944 = vmatprep.subr.mxu0 0.0
    %1945 = vmatpush2.msra.mxu0 0.0
    %1946 = vmatprep.subr.mxu0 0.0
    %1947 = vmatpush2.msra.mxu0 0.0
    %1948 = vmatprep.subr.mxu0 0.0
    %1949 = vmatpush2.msra.mxu0 0.0
    %1950 = vmatprep.subr.mxu0 0.0
    %1951 = vmatpush2.msra.mxu0 0.0
    %1952 = vmatprep.subr.mxu0 0.0
    %1953 = vmatpush2.msra.mxu0 0.0
    %1954 = vmatprep.subr.mxu0 0.0
    %1955 = vmatpush2.msra.mxu0 0.0
    %1956 = vmatprep.subr.mxu0 0.0
    %1957 = vmatpush2.msra.mxu0 0.0
    %1958 = vmatprep.subr.mxu0 0.0
    %1959 = vmatpush2.msra.mxu0 0.0
    %1960 = vmatprep.subr.mxu0 0.0
    %1961 = vmatpush2.msra.mxu0 0.0
    %1962 = vmatprep.subr.mxu0 0.0
    %1963 = vmatpush2.msra.mxu0 0.0
    %1964 = vmatprep.subr.mxu0 0.0
    %1965 = vmatpush2.msra.mxu0 0.0
    %1966 = vmatprep.subr.mxu0 0.0
    %1967 = vmatpush2.msra.mxu0 0.0
    %1968 = vmatprep.subr.mxu0 0.0
    %1969 = vmatpush2.msra.mxu0 0.0
    %1970 = vmatprep.subr.mxu0 0.0
    %1971 = vmatpush2.msra.mxu0 0.0
    %1972 = vmatprep.mubr.f32.mxu0 0.0
    %1973 = vmatmul.mubr.f32.gmra.mxu0 %v1906
    %v1974 = vpop.f32.mrf.mxu0
    %v1975 = vadd.f32 %v1903, %v1974
    %v1976 = vpop.f32.mrf.mxu0
    %1977 = vdwg.mxu0
    %v1978 = vmax.f32 %v1975, 0.0
    %vm1979 = vcmask 19456
    %1980 = vst.msk [vmem:[#allocation6] sm:$0xf] %vm1979, %v1978
    // Predicated region
    $region22: #{nirs_lstm_forward.1} parent=1 // pred_check
      _
    $region23: #{nirs_lstm_forward.1} parent=1 // pred_check_branch
      %1982 = sbr.rel (0) target = $region25
    $region24: #{nirs_lstm_forward.1} parent=1 // pred_region
      %s1984 = ssub.s32 64, 64
      %1985 = vsyncadd [#allocation5], %s1984
      %s1987 = sshll.u32 [#allocation6], 4
      %s1988 = int_to_ptr.vmem [resolvable:$true] %s1987
      %1990 = dma.vmem_to_hbm [thread:$0]  %s1988, 64, %s4, [#allocation5]
    $region25: #{nirs_lstm_forward.1} parent=1 // pred_fallthru
      _
    // Predicated region
    $region26: #{nirs_lstm_forward.1} parent=1 // pred_check
      _
    $region27: #{nirs_lstm_forward.1} parent=1 // pred_check_branch
      %1992 = sbr.rel (0) target = $region29
    $region28: #{nirs_lstm_forward.1} parent=1 // pred_region
      %1993 = dma.done [#allocation5], 64
    $region29: #{nirs_lstm_forward.1} parent=1 // pred_fallthru
      _
    %1994 = vsyncpa [#allocation4], 1
    %1995 = vsyncpa [#allocation5], 1

</llo_original>
